<compile_context>
chip_gen: v6e
topology: v6e:2x2x1
jax: 0.10.0
libtpu: 0.0.40
codegen_flags: <defaults>
</compile_context>

<pallas_src>
import functools

import jax
import jax.numpy as jnp
from jax.experimental import pallas as pl
from jax.experimental.pallas import tpu as pltpu

block_size = 32      # max sequence length supported by the causal mask
n_embd = 64
head_size = 16
# dropout = 0.0 -> identity, nothing to emit in the kernel

_LANE_GROUP = 128          # one vreg lane-tile; each of Q/K/V occupies its own group
_VMEM_BUDGET = 20 << 20    # conservative per-step working-set target used to size Bb
_VMEM_LIMIT = 48 << 20     # explicit scoped-VMEM limit (headroom under v7x's 64 MiB)


def _round_up(x, m):
    return (x + m - 1) // m * m


def _head_kernel(x_ref, w_ref, o_ref, *, head_dim, group):
    """One grid step processes a block of Bb batch elements.

    x_ref : (Bb, T, C)       VMEM  activations
    w_ref : (C, 3*group)     VMEM  fused [Wq|pad , Wk|pad , Wv|pad] weights (lane-tile groups)
    o_ref : (Bb, T*H)        VMEM  lane-dense output slab
    """
    Bb, T, C = x_ref.shape
    H = head_dim
    G = group

    # ---- fused QKV projection: one MXU matmul over the flattened batch*time dim ----
    x2 = x_ref[...].reshape(Bb * T, C)                       # merge leading dims (cheap)
    qkv = jnp.dot(x2, w_ref[...],
                  preferred_element_type=jnp.float32)        # (Bb*T, 3G) f32 accumulate

    # Lane-tile-aligned slices (each projection sits in its own 128-lane group).
    # q/k keep their zero padding: contracting over the padded axis is exact (zeros
    # contribute 0) and costs the same MXU pushes as a 16-deep contraction.
    q = qkv[:, 0 * G:1 * G].reshape(Bb, T, G)
    k = qkv[:, 1 * G:2 * G].reshape(Bb, T, G)
    v = qkv[:, 2 * G:2 * G + H].reshape(Bb, T, H)            # only the H valid value lanes

    # ---- scaled scores (PyTorch divides by sqrt(C) with C = n_embd, keep that) ----
    scale = 1.0 / (C ** 0.5)
    s = jnp.einsum('bth,bsh->bts', q, k,
                   preferred_element_type=jnp.float32) * scale        # (Bb, T, T)

    # causal mask, built once per grid step and broadcast over the batch block
    row = jax.lax.broadcasted_iota(jnp.int32, (T, T), 0)
    col = jax.lax.broadcasted_iota(jnp.int32, (T, T), 1)
    s = jnp.where((col <= row)[None, :, :], s, -jnp.inf)

    # ---- numerically-stable softmax along the key axis ----
    m = jnp.max(s, axis=-1, keepdims=True)
    e = jnp.exp(s - m)
    denom = jnp.sum(e, axis=-1, keepdims=True)
    p = e * pl.reciprocal(denom, approx=True)                # EUP slot, off the VPU path

    # ---- apply attention to values ----
    out = jnp.einsum('bts,bsh->bth', p, v,
                     preferred_element_type=jnp.float32)     # (Bb, T, H)

    # ---- lane-dense store: single sublane->lane relayout into the (Bb, T*H) slab ----
    o_ref[...] = out.reshape(Bb, T * H).astype(o_ref.dtype)


def _pick_block_b(B, T, C, H, wn):
    """Batch-block size: as large as the VMEM budget allows (up to 1024), sublane-aligned,
    never larger than the padded batch, and split in two for large B so both TensorCores
    (v7x) get work."""
    # Conservative f32 per-batch-row working-set estimate:
    #   double-buffered x block + qkv intermediate (+ padded q/k copies)
    #   + softmax temporaries + out tile + double-buffered out slab.
    per_row = 4 * (2 * T * C + 2 * T * wn + 4 * T * T + 3 * T * H)
    bb = min(1024, max(8, _VMEM_BUDGET // per_row))
    if B >= 128:                               # keep >= 2 grid steps for multi-TC parts
        bb = min(bb, _round_up(-(-B // 2), 8))
    bb = max(8, (bb // 8) * 8)                 # sublane-aligned
    return min(bb, _round_up(B, 8))            # never exceed the (padded) batch


def _fused_qkv_weight(wq, wk, wv, group=_LANE_GROUP):
    """(H, C) PyTorch nn.Linear weights -> (C, 3*group) fused weight, one 128-lane
    zero-padded group per projection (q | k | v)."""
    H, C = wq.shape
    assert H <= group, "head_size must fit in one lane group"

    def pad_group(w):
        return jnp.pad(w.T, ((0, 0), (0, group - H)))        # (C, group)

    return jnp.concatenate([pad_group(wq), pad_group(wk), pad_group(wv)], axis=1)


def head_forward(x, wk, wq, wv):
    """x: (B, T, C); wk/wq/wv: (H, C) in PyTorch nn.Linear weight layout (out, in).

    For repeated calls, jit this function (or precompute the fused weight) so the
    tiny weight-prep concatenate/pad is hoisted out of the launch path.
    """
    B, T, C = x.shape
    H = wk.shape[0]
    assert T <= block_size

    w_qkv = _fused_qkv_weight(wq, wk, wv)                     # (C, 3*128)
    Wn = w_qkv.shape[1]

    Bb = _pick_block_b(B, T, C, H, Wn)
    B_pad = _round_up(B, Bb)
    if B_pad != B:
        # Zero-pad the batch; padded rows flow through harmlessly (diag of the causal
        # mask is always kept, so no NaNs) and are sliced off below.
        x = jnp.pad(x, ((0, B_pad - B), (0, 0), (0, 0)))
    grid = (B_pad // Bb,)

    kernel = functools.partial(_head_kernel, head_dim=H, group=_LANE_GROUP)

    out_flat = pl.pallas_call(
        kernel,
        out_shape=jax.ShapeDtypeStruct((B_pad, T * H), x.dtype),
        grid_spec=pltpu.PrefetchScalarGridSpec(
            num_scalar_prefetch=0,
            grid=grid,
            in_specs=[
                pl.BlockSpec((Bb, T, C), lambda b: (b, 0, 0)),
                pl.BlockSpec((C, Wn), lambda b: (0, 0)),      # weights stay resident
            ],
            out_specs=pl.BlockSpec((Bb, T * H), lambda b: (b, 0)),
        ),
        compiler_params=pltpu.CompilerParams(
            # batch-block axis shards across TensorCores (2 on v7x) when grid > 1
            dimension_semantics=("parallel",),
            vmem_limit_bytes=_VMEM_LIMIT,
        ),
    )(x, w_qkv)

    return out_flat[:B].reshape(B, T, H)


def head_reference(x, wk, wq, wv):
    """Plain-JAX reference mirroring the PyTorch forward."""
    B, T, C = x.shape
    k = x @ wk.T
    q = x @ wq.T
    v = x @ wv.T
    wei = (q @ jnp.swapaxes(k, -2, -1)) / (C ** 0.5)
    tril = jnp.tril(jnp.ones((T, T), dtype=bool))
    wei = jnp.where(tril, wei, -jnp.inf)
    wei = jax.nn.softmax(wei, axis=-1)
    return wei @ v


if __name__ == "__main__":
    key = jax.random.PRNGKey(0)
    kx, kk, kq, kv, kx2 = jax.random.split(key, 5)

    C, H = n_embd, head_size
    bound = 1.0 / (C ** 0.5)
    wk = jax.random.uniform(kk, (H, C), jnp.float32, -bound, bound)
    wq = jax.random.uniform(kq, (H, C), jnp.float32, -bound, bound)
    wv = jax.random.uniform(kv, (H, C), jnp.float32, -bound, bound)

    fwd = jax.jit(head_forward)

    # Small primary test (B=2, T=8).
    B, T = 2, 8
    x = jax.random.normal(kx, (B, T, C), dtype=jnp.float32)
    out = jax.block_until_ready(fwd(x, wk, wq, wv))
    ref = head_reference(x, wk, wq, wv)
    assert out.shape == (B, T, H)
    # tolerance accounts for the EUP approximate reciprocal in the softmax denominator
    assert jnp.allclose(out, ref, atol=5e-3, rtol=5e-3), "mismatch vs reference (B=2,T=8)"

    # Secondary test exercising batch padding (B not a multiple of 8) and full block_size.
    B2, T2 = 10, block_size
    x2 = jax.random.normal(kx2, (B2, T2, C), dtype=jnp.float32)
    out2 = jax.block_until_ready(fwd(x2, wk, wq, wv))
    ref2 = head_reference(x2, wk, wq, wv)
    assert out2.shape == (B2, T2, H)
    assert jnp.allclose(out2, ref2, atol=5e-3, rtol=5e-3), "mismatch vs reference (B=10,T=32)"

    print("KERNEL_OK")
</pallas_src>

<mosaic_0001>
module attributes {stable_mosaic.version = 11 : i64} {
  func.func @_head_kernel(%arg0: i32, %arg1: memref<8x8x64xf32, #tpu.memory_space<vmem>>, %arg2: memref<64x384xf32, #tpu.memory_space<vmem>>, %arg3: memref<8x128xf32, #tpu.memory_space<vmem>>) attributes {dimension_semantics = [#tpu.dimension_semantics<parallel>], iteration_bounds = array<i64: 1>, scalar_prefetch = 0 : i64, scratch_operands = 0 : i64, tpu.core_type = #tpu.core_type<tc>, window_params = [{transform_indices = @transform_0, window_bounds = array<i64: 8, 8, 64>}, {pipeline_mode = #tpu.pipeline_mode<synchronous>, transform_indices = @transform_1, window_bounds = array<i64: 64, 384>}, {transform_indices = @transform_2, window_bounds = array<i64: 8, 128>}]} {
    %c0 = arith.constant 0 : index
    %c0_0 = arith.constant 0 : index
    %c0_1 = arith.constant 0 : index
    %0 = vector.load %arg1[%c0, %c0_0, %c0_1] : memref<8x8x64xf32, #tpu.memory_space<vmem>>, vector<8x8x64xf32>
    %1 = vector.shape_cast %0 : vector<8x8x64xf32> to vector<64x64xf32>
    %c0_2 = arith.constant 0 : index
    %c0_3 = arith.constant 0 : index
    %2 = vector.load %arg2[%c0_2, %c0_3] : memref<64x384xf32, #tpu.memory_space<vmem>>, vector<64x384xf32>
    %cst = arith.constant dense<0.000000e+00> : vector<64x384xf32>
    %3 = tpu.matmul %1, %2, %cst {dimension_numbers = #tpu.dot_dimension_numbers<[1], [0], [0], [1], [0, 0, 1, 1], [], []>} : vector<64x64xf32>, vector<64x384xf32>, vector<64x384xf32> -> vector<64x384xf32>
    %4 = vector.extract_strided_slice %3 {offsets = [0, 0], sizes = [64, 128], strides = [1, 1]} : vector<64x384xf32> to vector<64x128xf32>
    %5 = vector.shape_cast %4 : vector<64x128xf32> to vector<8x8x128xf32>
    %6 = vector.extract_strided_slice %3 {offsets = [0, 128], sizes = [64, 128], strides = [1, 1]} : vector<64x384xf32> to vector<64x128xf32>
    %7 = vector.shape_cast %6 : vector<64x128xf32> to vector<8x8x128xf32>
    %8 = vector.extract_strided_slice %3 {offsets = [0, 256], sizes = [64, 16], strides = [1, 1]} : vector<64x384xf32> to vector<64x16xf32>
    %9 = vector.shape_cast %8 : vector<64x16xf32> to vector<8x8x16xf32>
    "tpu.trace_start"() <{level = 10 : i32, message = "bth,bsh->bts"}> : () -> ()
    %cst_4 = arith.constant dense<0.000000e+00> : vector<8x8x8xf32>
    %10 = tpu.matmul %5, %7, %cst_4 {dimension_numbers = #tpu.dot_dimension_numbers<[2], [2], [1], [1], [0, 0, 0, 1, 1, 1], [0], [0]>} : vector<8x8x128xf32>, vector<8x8x128xf32>, vector<8x8x8xf32> -> vector<8x8x8xf32>
    "tpu.trace_stop"() : () -> ()
    %cst_5 = arith.constant 1.250000e-01 : f32
    %11 = vector.broadcast %cst_5 : f32 to vector<8x8x8xf32>
    %12 = arith.mulf %10, %11 : vector<8x8x8xf32>
    %13 = tpu.iota {dimensions = array<i32: 0>} : vector<8x8xi32>
    %14 = tpu.iota {dimensions = array<i32: 1>} : vector<8x8xi32>
    %15 = arith.cmpi sle, %14, %13 : vector<8x8xi32>
    %16 = vector.shape_cast %15 : vector<8x8xi1> to vector<1x8x8xi1>
    %cst_6 = arith.constant 0xFF800000 : f32
    %17 = vector.shape_cast %16 : vector<1x8x8xi1> to vector<1x8x8xi1>
    %18 = vector.broadcast %17 : vector<1x8x8xi1> to vector<8x8x8xi1>
    %19 = vector.broadcast %cst_6 : f32 to vector<8x8x8xf32>
    %20 = arith.select %18, %12, %19 : vector<8x8x8xi1>, vector<8x8x8xf32>
    %cst_7 = arith.constant dense<0xFF800000> : vector<8x8xf32>
    %21 = vector.multi_reduction <maximumf>, %20, %cst_7 [2] : vector<8x8x8xf32> to vector<8x8xf32>
    %22 = vector.shape_cast %21 : vector<8x8xf32> to vector<8x8x1xf32>
    %23 = vector.broadcast %22 : vector<8x8x1xf32> to vector<8x8x8xf32>
    %24 = arith.subf %20, %23 : vector<8x8x8xf32>
    %25 = math.exp %24 : vector<8x8x8xf32>
    %cst_8 = arith.constant dense<0.000000e+00> : vector<8x8xf32>
    %26 = vector.multi_reduction <add>, %25, %cst_8 [2] : vector<8x8x8xf32> to vector<8x8xf32>
    %27 = vector.shape_cast %26 : vector<8x8xf32> to vector<8x8x1xf32>
    %28 = tpu.reciprocal %27 {approx = true} : vector<8x8x1xf32> -> vector<8x8x1xf32>
    %29 = vector.broadcast %28 : vector<8x8x1xf32> to vector<8x8x8xf32>
    %30 = arith.mulf %25, %29 : vector<8x8x8xf32>
    "tpu.trace_start"() <{level = 10 : i32, message = "bts,bsh->bth"}> : () -> ()
    %cst_9 = arith.constant dense<0.000000e+00> : vector<8x8x16xf32>
    %31 = tpu.matmul %30, %9, %cst_9 {dimension_numbers = #tpu.dot_dimension_numbers<[2], [1], [1], [2], [0, 0, 0, 1, 1, 2], [0], [0]>} : vector<8x8x8xf32>, vector<8x8x16xf32>, vector<8x8x16xf32> -> vector<8x8x16xf32>
    "tpu.trace_stop"() : () -> ()
    %32 = vector.shape_cast %31 : vector<8x8x16xf32> to vector<8x128xf32>
    %c0_10 = arith.constant 0 : index
    %c0_11 = arith.constant 0 : index
    %33 = vector.load %arg3[%c0_10, %c0_11] : memref<8x128xf32, #tpu.memory_space<vmem>>, vector<8x128xf32>
    tpu.vector_store %arg3[%c0_10, %c0_11], %32 {strides = array<i32>} : memref<8x128xf32, #tpu.memory_space<vmem>>, vector<8x128xf32>,
    return
  }
  func.func @transform_0(%arg0: i32) -> (i32, i32, i32) {
    %c0_i32 = arith.constant 0 : i32
    %c0_i32_0 = arith.constant 0 : i32
    %c0_i32_1 = arith.constant 0 : i32
    return %arg0, %c0_i32, %c0_i32_0 : i32, i32, i32
  }
  func.func @transform_1(%arg0: i32) -> (i32, i32) {
    %c0_i32 = arith.constant 0 : i32
    %c0_i32_0 = arith.constant 0 : i32
    %c0_i32_1 = arith.constant 0 : i32
    return %c0_i32, %c0_i32_0 : i32, i32
  }
  func.func @transform_2(%arg0: i32) -> (i32, i32) {
    %c0_i32 = arith.constant 0 : i32
    %c0_i32_0 = arith.constant 0 : i32
    return %arg0, %c0_i32 : i32, i32
  }
}

</mosaic_0001>

<llo_original>
// kernel: head_forward.1
$region0: #{head_forward.1}
  #allocation0 [shape = 'u32[]', space=smem, size = 0x4, offset = 0x4, fixed_abs, tag = 'smem constant byte address 0x4 - core index']
  #allocation1 [shape = 'u32[144,128]{1,0:T(1,128)}', space=vmem, size = 0x12000, scoped, tag = 'internal scratch']
  %s0 = inlined_call_operand.vmem [shape: f32[8,8,64], index: 0, kind: input, shape index: {}]
  %s1 = inlined_call_operand.vmem [shape: f32[64,384], index: 1, kind: input, shape index: {}]
  %s2 = inlined_call_operand.vmem [shape: f32[8,128], index: 2, kind: output, shape index: {}]
  %s3 = sld [smem:[#allocation0]]
  $region18: #{head_forward.1} parent=0
    _
  %s5 = ssub.s32 1, %s3
  %s6 = scalar_select 0, %s5, %s3
  // Predicated region
  $region2: #{head_forward.1} parent=0 // pred_check
    _
  $region3: #{head_forward.1} parent=0 // pred_check_branch
    %8 = sbr.rel (0) target = $region5
  $region4: #{head_forward.1} parent=0 // pred_region
    _
  $region5: #{head_forward.1} parent=0 // pred_fallthru
    _
  // Predicated region
  $region6: #{head_forward.1} parent=0 // pred_check
    _
  $region7: #{head_forward.1} parent=0 // pred_check_branch
    %10 = sbr.rel (0) target = $region9
  $region8: #{head_forward.1} parent=0 // pred_region
    _
  $region9: #{head_forward.1} parent=0 // pred_fallthru
    _
  %v11 = vld [vmem:[%s0] sm:$0xff]
  %v12 = vld [vmem:[%s0 + $0x8] sm:$0xff]
  %v13 = vld [vmem:[%s0 + $0x10] sm:$0xff]
  %v14 = vld [vmem:[%s0 + $0x18] sm:$0xff]
  %v15 = vld [vmem:[%s0 + $0x20] sm:$0xff]
  %v16 = vld [vmem:[%s0 + $0x28] sm:$0xff]
  %v17 = vld [vmem:[%s0 + $0x30] sm:$0xff]
  %v18 = vld [vmem:[%s0 + $0x38] sm:$0xff]
  %v19 = vld [vmem:[%s1] sm:$0xff]
  %v20 = vld [vmem:[%s1 + $0x8] sm:$0xff]
  %v21 = vld [vmem:[%s1 + $0x10] sm:$0xff]
  %v22 = vld [vmem:[%s1 + $0x18] sm:$0xff]
  %v23 = vld [vmem:[%s1 + $0x20] sm:$0xff]
  %v24 = vld [vmem:[%s1 + $0x28] sm:$0xff]
  %v25 = vld [vmem:[%s1 + $0x30] sm:$0xff]
  %v26 = vld [vmem:[%s1 + $0x38] sm:$0xff]
  %v27 = vld [vmem:[%s1 + $0x40] sm:$0xff]
  %v28 = vld [vmem:[%s1 + $0x48] sm:$0xff]
  %v29 = vld [vmem:[%s1 + $0x50] sm:$0xff]
  %v30 = vld [vmem:[%s1 + $0x58] sm:$0xff]
  %v31 = vld [vmem:[%s1 + $0x60] sm:$0xff]
  %v32 = vld [vmem:[%s1 + $0x68] sm:$0xff]
  %v33 = vld [vmem:[%s1 + $0x70] sm:$0xff]
  %v34 = vld [vmem:[%s1 + $0x78] sm:$0xff]
  %v35 = vld [vmem:[%s1 + $0x80] sm:$0xff]
  %v36 = vld [vmem:[%s1 + $0x88] sm:$0xff]
  %v37 = vld [vmem:[%s1 + $0x90] sm:$0xff]
  %v38 = vld [vmem:[%s1 + $0x98] sm:$0xff]
  %v39 = vld [vmem:[%s1 + $0xa0] sm:$0xff]
  %v40 = vld [vmem:[%s1 + $0xa8] sm:$0xff]
  %v41 = vld [vmem:[%s1 + $0xb0] sm:$0xff]
  %v42 = vld [vmem:[%s1 + $0xb8] sm:$0xff]
  %vm43 = vcmask 523264
  %v45 = vsel %vm43, %v11, 0
  %v48 = vsel %vm43, %v12, 0
  %v51 = vsel %vm43, %v13, 0
  %v54 = vsel %vm43, %v14, 0
  %v57 = vsel %vm43, %v15, 0
  %v60 = vsel %vm43, %v16, 0
  %v63 = vsel %vm43, %v17, 0
  %v66 = vsel %vm43, %v18, 0
  %68 = vmatprep.subr.mxu0 0.0
  %69 = vmatpush1.msra.mxu0 0.0
  %70 = vmatprep.subr.mxu0 0.0
  %71 = vmatpush1.msra.mxu0 0.0
  %72 = vmatprep.subr.mxu0 0.0
  %73 = vmatpush1.msra.mxu0 0.0
  %74 = vmatprep.subr.mxu0 0.0
  %75 = vmatpush1.msra.mxu0 0.0
  %76 = vmatprep.subr.mxu0 0.0
  %77 = vmatpush1.msra.mxu0 0.0
  %78 = vmatprep.subr.mxu0 0.0
  %79 = vmatpush1.msra.mxu0 0.0
  %80 = vmatprep.subr.mxu0 0.0
  %81 = vmatpush1.msra.mxu0 0.0
  %82 = vmatprep.subr.mxu0 0.0
  %83 = vmatpush1.msra.mxu0 0.0
  %84 = vmatprep.subr.mxu0 %v41
  %85 = vmatpush1.msra.mxu0 %v40
  %86 = vmatprep.subr.mxu0 %v38
  %87 = vmatpush1.msra.mxu0 %v37
  %88 = vmatprep.subr.mxu0 %v35
  %89 = vmatpush1.msra.mxu0 %v34
  %90 = vmatprep.subr.mxu0 %v32
  %91 = vmatpush1.msra.mxu0 %v31
  %92 = vmatprep.subr.mxu0 %v29
  %93 = vmatpush1.msra.mxu0 %v28
  %94 = vmatprep.subr.mxu0 %v26
  %95 = vmatpush1.msra.mxu0 %v25
  %96 = vmatprep.subr.mxu0 %v23
  %97 = vmatpush1.msra.mxu0 %v22
  %98 = vmatprep.subr.mxu0 %v20
  %99 = vmatpush1.msra.mxu0 %v19
  %100 = vmatprep.subr.mxu0 0.0
  %101 = vmatpush2.msra.mxu0 0.0
  %102 = vmatprep.subr.mxu0 0.0
  %103 = vmatpush2.msra.mxu0 0.0
  %104 = vmatprep.subr.mxu0 0.0
  %105 = vmatpush2.msra.mxu0 0.0
  %106 = vmatprep.subr.mxu0 0.0
  %107 = vmatpush2.msra.mxu0 0.0
  %108 = vmatprep.subr.mxu0 0.0
  %109 = vmatpush2.msra.mxu0 0.0
  %110 = vmatprep.subr.mxu0 0.0
  %111 = vmatpush2.msra.mxu0 0.0
  %112 = vmatprep.subr.mxu0 0.0
  %113 = vmatpush2.msra.mxu0 0.0
  %114 = vmatprep.subr.mxu0 0.0
  %115 = vmatpush2.msra.mxu0 0.0
  %116 = vmatprep.subr.mxu0 0.0
  %117 = vmatpush2.msra.mxu0 0.0
  %118 = vmatprep.subr.mxu0 0.0
  %119 = vmatpush2.msra.mxu0 0.0
  %120 = vmatprep.subr.mxu0 0.0
  %121 = vmatpush2.msra.mxu0 0.0
  %122 = vmatprep.subr.mxu0 0.0
  %123 = vmatpush2.msra.mxu0 0.0
  %124 = vmatprep.subr.mxu0 0.0
  %125 = vmatpush2.msra.mxu0 0.0
  %126 = vmatprep.subr.mxu0 0.0
  %127 = vmatpush2.msra.mxu0 0.0
  %128 = vmatprep.subr.mxu0 0.0
  %129 = vmatpush2.msra.mxu0 0.0
  %130 = vmatprep.subr.mxu0 0.0
  %131 = vmatpush2.msra.mxu0 0.0
  %132 = vmatprep.mubr.f32.mxu0 0.0
  %133 = vmatmul.mubr.f32.gmra.mxu0 %v45
  %v134 = vpop.f32.mrf.mxu0
  %v135 = vadd.f32 0.0, %v134
  %v136 = vpop.f32.mrf.mxu0
  %v137 = vadd.f32 0.0, %v136
  %138 = vmatprep.mubr.f32.mxu0 0.0
  %139 = vmatmul.mubr.f32.gmra.mxu0 %v48
  %v140 = vpop.f32.mrf.mxu0
  %v141 = vadd.f32 0.0, %v140
  %v142 = vpop.f32.mrf.mxu0
  %v143 = vadd.f32 0.0, %v142
  %144 = vmatprep.mubr.f32.mxu0 0.0
  %145 = vmatmul.mubr.f32.gmra.mxu0 %v51
  %v146 = vpop.f32.mrf.mxu0
  %v147 = vadd.f32 0.0, %v146
  %v148 = vpop.f32.mrf.mxu0
  %v149 = vadd.f32 0.0, %v148
  %150 = vmatprep.mubr.f32.mxu0 0.0
  %151 = vmatmul.mubr.f32.gmra.mxu0 %v54
  %v152 = vpop.f32.mrf.mxu0
  %v153 = vadd.f32 0.0, %v152
  %v154 = vpop.f32.mrf.mxu0
  %v155 = vadd.f32 0.0, %v154
  %156 = vmatprep.mubr.f32.mxu0 0.0
  %157 = vmatmul.mubr.f32.gmra.mxu0 %v57
  %v158 = vpop.f32.mrf.mxu0
  %v159 = vadd.f32 0.0, %v158
  %v160 = vpop.f32.mrf.mxu0
  %v161 = vadd.f32 0.0, %v160
  %162 = vmatprep.mubr.f32.mxu0 0.0
  %163 = vmatmul.mubr.f32.gmra.mxu0 %v60
  %v164 = vpop.f32.mrf.mxu0
  %v165 = vadd.f32 0.0, %v164
  %v166 = vpop.f32.mrf.mxu0
  %v167 = vadd.f32 0.0, %v166
  %168 = vmatprep.mubr.f32.mxu0 0.0
  %169 = vmatmul.mubr.f32.gmra.mxu0 %v63
  %v170 = vpop.f32.mrf.mxu0
  %v171 = vadd.f32 0.0, %v170
  %v172 = vpop.f32.mrf.mxu0
  %v173 = vadd.f32 0.0, %v172
  %174 = vmatprep.mubr.f32.mxu0 0.0
  %175 = vmatmul.mubr.f32.gmra.mxu0 %v66
  %v176 = vpop.f32.mrf.mxu0
  %v177 = vadd.f32 0.0, %v176
  %v178 = vpop.f32.mrf.mxu0
  %v179 = vadd.f32 0.0, %v178
  %180 = vdwg.mxu0
  %181 = vmatprep.subr.mxu0 0.0
  %182 = vmatpush1.msra.mxu0 0.0
  %183 = vmatprep.subr.mxu0 0.0
  %184 = vmatpush1.msra.mxu0 0.0
  %185 = vmatprep.subr.mxu0 0.0
  %186 = vmatpush1.msra.mxu0 0.0
  %187 = vmatprep.subr.mxu0 0.0
  %188 = vmatpush1.msra.mxu0 0.0
  %189 = vmatprep.subr.mxu0 0.0
  %190 = vmatpush1.msra.mxu0 0.0
  %191 = vmatprep.subr.mxu0 0.0
  %192 = vmatpush1.msra.mxu0 0.0
  %193 = vmatprep.subr.mxu0 0.0
  %194 = vmatpush1.msra.mxu0 0.0
  %195 = vmatprep.subr.mxu0 0.0
  %196 = vmatpush1.msra.mxu0 0.0
  %197 = vmatprep.subr.mxu0 0.0
  %198 = vmatpush1.msra.mxu0 %v42
  %199 = vmatprep.subr.mxu0 0.0
  %200 = vmatpush1.msra.mxu0 %v39
  %201 = vmatprep.subr.mxu0 0.0
  %202 = vmatpush1.msra.mxu0 %v36
  %203 = vmatprep.subr.mxu0 0.0
  %204 = vmatpush1.msra.mxu0 %v33
  %205 = vmatprep.subr.mxu0 0.0
  %206 = vmatpush1.msra.mxu0 %v30
  %207 = vmatprep.subr.mxu0 0.0
  %208 = vmatpush1.msra.mxu0 %v27
  %209 = vmatprep.subr.mxu0 0.0
  %210 = vmatpush1.msra.mxu0 %v24
  %211 = vmatprep.subr.mxu0 0.0
  %212 = vmatpush1.msra.mxu0 %v21
  %213 = vmatprep.subr.mxu0 0.0
  %214 = vmatpush2.msra.mxu0 0.0
  %215 = vmatprep.subr.mxu0 0.0
  %216 = vmatpush2.msra.mxu0 0.0
  %217 = vmatprep.subr.mxu0 0.0
  %218 = vmatpush2.msra.mxu0 0.0
  %219 = vmatprep.subr.mxu0 0.0
  %220 = vmatpush2.msra.mxu0 0.0
  %221 = vmatprep.subr.mxu0 0.0
  %222 = vmatpush2.msra.mxu0 0.0
  %223 = vmatprep.subr.mxu0 0.0
  %224 = vmatpush2.msra.mxu0 0.0
  %225 = vmatprep.subr.mxu0 0.0
  %226 = vmatpush2.msra.mxu0 0.0
  %227 = vmatprep.subr.mxu0 0.0
  %228 = vmatpush2.msra.mxu0 0.0
  %229 = vmatprep.subr.mxu0 0.0
  %230 = vmatpush2.msra.mxu0 0.0
  %231 = vmatprep.subr.mxu0 0.0
  %232 = vmatpush2.msra.mxu0 0.0
  %233 = vmatprep.subr.mxu0 0.0
  %234 = vmatpush2.msra.mxu0 0.0
  %235 = vmatprep.subr.mxu0 0.0
  %236 = vmatpush2.msra.mxu0 0.0
  %237 = vmatprep.subr.mxu0 0.0
  %238 = vmatpush2.msra.mxu0 0.0
  %239 = vmatprep.subr.mxu0 0.0
  %240 = vmatpush2.msra.mxu0 0.0
  %241 = vmatprep.subr.mxu0 0.0
  %242 = vmatpush2.msra.mxu0 0.0
  %243 = vmatprep.subr.mxu0 0.0
  %244 = vmatpush2.msra.mxu0 0.0
  %245 = vmatprep.mubr.f32.mxu0 0.0
  %246 = vmatmul.mubr.f32.gmra.mxu0 %v45
  %v247 = vpop.f32.mrf.mxu0
  %v248 = vadd.f32 0.0, %v247
  %v249 = vpop.f32.mrf.mxu0
  %250 = vmatprep.mubr.f32.mxu0 0.0
  %251 = vmatmul.mubr.f32.gmra.mxu0 %v48
  %v252 = vpop.f32.mrf.mxu0
  %v253 = vadd.f32 0.0, %v252
  %v254 = vpop.f32.mrf.mxu0
  %255 = vmatprep.mubr.f32.mxu0 0.0
  %256 = vmatmul.mubr.f32.gmra.mxu0 %v51
  %v257 = vpop.f32.mrf.mxu0
  %v258 = vadd.f32 0.0, %v257
  %v259 = vpop.f32.mrf.mxu0
  %260 = vmatprep.mubr.f32.mxu0 0.0
  %261 = vmatmul.mubr.f32.gmra.mxu0 %v54
  %v262 = vpop.f32.mrf.mxu0
  %v263 = vadd.f32 0.0, %v262
  %v264 = vpop.f32.mrf.mxu0
  %265 = vmatprep.mubr.f32.mxu0 0.0
  %266 = vmatmul.mubr.f32.gmra.mxu0 %v57
  %v267 = vpop.f32.mrf.mxu0
  %v268 = vadd.f32 0.0, %v267
  %v269 = vpop.f32.mrf.mxu0
  %270 = vmatprep.mubr.f32.mxu0 0.0
  %271 = vmatmul.mubr.f32.gmra.mxu0 %v60
  %v272 = vpop.f32.mrf.mxu0
  %v273 = vadd.f32 0.0, %v272
  %v274 = vpop.f32.mrf.mxu0
  %275 = vmatprep.mubr.f32.mxu0 0.0
  %276 = vmatmul.mubr.f32.gmra.mxu0 %v63
  %v277 = vpop.f32.mrf.mxu0
  %v278 = vadd.f32 0.0, %v277
  %v279 = vpop.f32.mrf.mxu0
  %280 = vmatprep.mubr.f32.mxu0 0.0
  %281 = vmatmul.mubr.f32.gmra.mxu0 %v66
  %v282 = vpop.f32.mrf.mxu0
  %v283 = vadd.f32 0.0, %v282
  %v284 = vpop.f32.mrf.mxu0
  %285 = vdwg.mxu0
  %286 = vmatprep.subr.mxu0 0.0
  %287 = vmatpush1.xpose.msra.mxu0 0.0
  %288 = vmatprep.subr.mxu0 0.0
  %289 = vmatpush1.xpose.msra.mxu0 0.0
  %290 = vmatprep.subr.mxu0 0.0
  %291 = vmatpush1.xpose.msra.mxu0 0.0
  %292 = vmatprep.subr.mxu0 0.0
  %293 = vmatpush1.xpose.msra.mxu0 0.0
  %294 = vmatprep.subr.mxu0 0.0
  %295 = vmatpush1.xpose.msra.mxu0 0.0
  %296 = vmatprep.subr.mxu0 0.0
  %297 = vmatpush1.xpose.msra.mxu0 0.0
  %298 = vmatprep.subr.mxu0 0.0
  %299 = vmatpush1.xpose.msra.mxu0 0.0
  %300 = vmatprep.subr.mxu0 0.0
  %301 = vmatpush1.xpose.msra.mxu0 0.0
  %302 = vmatprep.subr.mxu0 0.0
  %303 = vmatpush1.xpose.msra.mxu0 0.0
  %304 = vmatprep.subr.mxu0 0.0
  %305 = vmatpush1.xpose.msra.mxu0 0.0
  %306 = vmatprep.subr.mxu0 0.0
  %307 = vmatpush1.xpose.msra.mxu0 0.0
  %308 = vmatprep.subr.mxu0 0.0
  %309 = vmatpush1.xpose.msra.mxu0 0.0
  %310 = vmatprep.subr.mxu0 0.0
  %311 = vmatpush1.xpose.msra.mxu0 0.0
  %312 = vmatprep.subr.mxu0 0.0
  %313 = vmatpush1.xpose.msra.mxu0 0.0
  %314 = vmatprep.subr.mxu0 0.0
  %315 = vmatpush1.xpose.msra.mxu0 0.0
  %316 = vmatprep.subr.mxu0 0.0
  %317 = vmatpush1.xpose.msra.mxu0 %v137
  %318 = vmatprep.subr.mxu0 0.0
  %319 = vmatpush2.xpose.msra.mxu0 0.0
  %320 = vmatprep.subr.mxu0 0.0
  %321 = vmatpush2.xpose.msra.mxu0 0.0
  %322 = vmatprep.subr.mxu0 0.0
  %323 = vmatpush2.xpose.msra.mxu0 0.0
  %324 = vmatprep.subr.mxu0 0.0
  %325 = vmatpush2.xpose.msra.mxu0 0.0
  %326 = vmatprep.subr.mxu0 0.0
  %327 = vmatpush2.xpose.msra.mxu0 0.0
  %328 = vmatprep.subr.mxu0 0.0
  %329 = vmatpush2.xpose.msra.mxu0 0.0
  %330 = vmatprep.subr.mxu0 0.0
  %331 = vmatpush2.xpose.msra.mxu0 0.0
  %332 = vmatprep.subr.mxu0 0.0
  %333 = vmatpush2.xpose.msra.mxu0 0.0
  %334 = vmatprep.subr.mxu0 0.0
  %335 = vmatpush2.xpose.msra.mxu0 0.0
  %336 = vmatprep.subr.mxu0 0.0
  %337 = vmatpush2.xpose.msra.mxu0 0.0
  %338 = vmatprep.subr.mxu0 0.0
  %339 = vmatpush2.xpose.msra.mxu0 0.0
  %340 = vmatprep.subr.mxu0 0.0
  %341 = vmatpush2.xpose.msra.mxu0 0.0
  %342 = vmatprep.subr.mxu0 0.0
  %343 = vmatpush2.xpose.msra.mxu0 0.0
  %344 = vmatprep.subr.mxu0 0.0
  %345 = vmatpush2.xpose.msra.mxu0 0.0
  %346 = vmatprep.subr.mxu0 0.0
  %347 = vmatpush2.xpose.msra.mxu0 0.0
  %348 = vmatprep.subr.mxu0 0.0
  %349 = vmatpush2.xpose.msra.mxu0 0.0
  %350 = vmatprep.mubr.f32.mxu0 0.0
  %351 = vmatmul.mubr.f32.gmra.mxu0 %v135
  %v352 = vpop.f32.mrf.mxu0
  %v353 = vadd.f32 0.0, %v352
  %v354 = vpop.f32.mrf.mxu0
  %355 = vdwg.mxu0
  %356 = vmatprep.subr.mxu0 0.0
  %357 = vmatpush1.xpose.msra.mxu0 0.0
  %358 = vmatprep.subr.mxu0 0.0
  %359 = vmatpush1.xpose.msra.mxu0 0.0
  %360 = vmatprep.subr.mxu0 0.0
  %361 = vmatpush1.xpose.msra.mxu0 0.0
  %362 = vmatprep.subr.mxu0 0.0
  %363 = vmatpush1.xpose.msra.mxu0 0.0
  %364 = vmatprep.subr.mxu0 0.0
  %365 = vmatpush1.xpose.msra.mxu0 0.0
  %366 = vmatprep.subr.mxu0 0.0
  %367 = vmatpush1.xpose.msra.mxu0 0.0
  %368 = vmatprep.subr.mxu0 0.0
  %369 = vmatpush1.xpose.msra.mxu0 0.0
  %370 = vmatprep.subr.mxu0 0.0
  %371 = vmatpush1.xpose.msra.mxu0 0.0
  %372 = vmatprep.subr.mxu0 0.0
  %373 = vmatpush1.xpose.msra.mxu0 0.0
  %374 = vmatprep.subr.mxu0 0.0
  %375 = vmatpush1.xpose.msra.mxu0 0.0
  %376 = vmatprep.subr.mxu0 0.0
  %377 = vmatpush1.xpose.msra.mxu0 0.0
  %378 = vmatprep.subr.mxu0 0.0
  %379 = vmatpush1.xpose.msra.mxu0 0.0
  %380 = vmatprep.subr.mxu0 0.0
  %381 = vmatpush1.xpose.msra.mxu0 0.0
  %382 = vmatprep.subr.mxu0 0.0
  %383 = vmatpush1.xpose.msra.mxu0 0.0
  %384 = vmatprep.subr.mxu0 0.0
  %385 = vmatpush1.xpose.msra.mxu0 0.0
  %386 = vmatprep.subr.mxu0 0.0
  %387 = vmatpush1.xpose.msra.mxu0 %v143
  %388 = vmatprep.subr.mxu0 0.0
  %389 = vmatpush2.xpose.msra.mxu0 0.0
  %390 = vmatprep.subr.mxu0 0.0
  %391 = vmatpush2.xpose.msra.mxu0 0.0
  %392 = vmatprep.subr.mxu0 0.0
  %393 = vmatpush2.xpose.msra.mxu0 0.0
  %394 = vmatprep.subr.mxu0 0.0
  %395 = vmatpush2.xpose.msra.mxu0 0.0
  %396 = vmatprep.subr.mxu0 0.0
  %397 = vmatpush2.xpose.msra.mxu0 0.0
  %398 = vmatprep.subr.mxu0 0.0
  %399 = vmatpush2.xpose.msra.mxu0 0.0
  %400 = vmatprep.subr.mxu0 0.0
  %401 = vmatpush2.xpose.msra.mxu0 0.0
  %402 = vmatprep.subr.mxu0 0.0
  %403 = vmatpush2.xpose.msra.mxu0 0.0
  %404 = vmatprep.subr.mxu0 0.0
  %405 = vmatpush2.xpose.msra.mxu0 0.0
  %406 = vmatprep.subr.mxu0 0.0
  %407 = vmatpush2.xpose.msra.mxu0 0.0
  %408 = vmatprep.subr.mxu0 0.0
  %409 = vmatpush2.xpose.msra.mxu0 0.0
  %410 = vmatprep.subr.mxu0 0.0
  %411 = vmatpush2.xpose.msra.mxu0 0.0
  %412 = vmatprep.subr.mxu0 0.0
  %413 = vmatpush2.xpose.msra.mxu0 0.0
  %414 = vmatprep.subr.mxu0 0.0
  %415 = vmatpush2.xpose.msra.mxu0 0.0
  %416 = vmatprep.subr.mxu0 0.0
  %417 = vmatpush2.xpose.msra.mxu0 0.0
  %418 = vmatprep.subr.mxu0 0.0
  %419 = vmatpush2.xpose.msra.mxu0 0.0
  %420 = vmatprep.mubr.f32.mxu0 0.0
  %421 = vmatmul.mubr.f32.gmra.mxu0 %v141
  %v422 = vpop.f32.mrf.mxu0
  %v423 = vadd.f32 0.0, %v422
  %v424 = vpop.f32.mrf.mxu0
  %425 = vdwg.mxu0
  %426 = vmatprep.subr.mxu0 0.0
  %427 = vmatpush1.xpose.msra.mxu0 0.0
  %428 = vmatprep.subr.mxu0 0.0
  %429 = vmatpush1.xpose.msra.mxu0 0.0
  %430 = vmatprep.subr.mxu0 0.0
  %431 = vmatpush1.xpose.msra.mxu0 0.0
  %432 = vmatprep.subr.mxu0 0.0
  %433 = vmatpush1.xpose.msra.mxu0 0.0
  %434 = vmatprep.subr.mxu0 0.0
  %435 = vmatpush1.xpose.msra.mxu0 0.0
  %436 = vmatprep.subr.mxu0 0.0
  %437 = vmatpush1.xpose.msra.mxu0 0.0
  %438 = vmatprep.subr.mxu0 0.0
  %439 = vmatpush1.xpose.msra.mxu0 0.0
  %440 = vmatprep.subr.mxu0 0.0
  %441 = vmatpush1.xpose.msra.mxu0 0.0
  %442 = vmatprep.subr.mxu0 0.0
  %443 = vmatpush1.xpose.msra.mxu0 0.0
  %444 = vmatprep.subr.mxu0 0.0
  %445 = vmatpush1.xpose.msra.mxu0 0.0
  %446 = vmatprep.subr.mxu0 0.0
  %447 = vmatpush1.xpose.msra.mxu0 0.0
  %448 = vmatprep.subr.mxu0 0.0
  %449 = vmatpush1.xpose.msra.mxu0 0.0
  %450 = vmatprep.subr.mxu0 0.0
  %451 = vmatpush1.xpose.msra.mxu0 0.0
  %452 = vmatprep.subr.mxu0 0.0
  %453 = vmatpush1.xpose.msra.mxu0 0.0
  %454 = vmatprep.subr.mxu0 0.0
  %455 = vmatpush1.xpose.msra.mxu0 0.0
  %456 = vmatprep.subr.mxu0 0.0
  %457 = vmatpush1.xpose.msra.mxu0 %v149
  %458 = vmatprep.subr.mxu0 0.0
  %459 = vmatpush2.xpose.msra.mxu0 0.0
  %460 = vmatprep.subr.mxu0 0.0
  %461 = vmatpush2.xpose.msra.mxu0 0.0
  %462 = vmatprep.subr.mxu0 0.0
  %463 = vmatpush2.xpose.msra.mxu0 0.0
  %464 = vmatprep.subr.mxu0 0.0
  %465 = vmatpush2.xpose.msra.mxu0 0.0
  %466 = vmatprep.subr.mxu0 0.0
  %467 = vmatpush2.xpose.msra.mxu0 0.0
  %468 = vmatprep.subr.mxu0 0.0
  %469 = vmatpush2.xpose.msra.mxu0 0.0
  %470 = vmatprep.subr.mxu0 0.0
  %471 = vmatpush2.xpose.msra.mxu0 0.0
  %472 = vmatprep.subr.mxu0 0.0
  %473 = vmatpush2.xpose.msra.mxu0 0.0
  %474 = vmatprep.subr.mxu0 0.0
  %475 = vmatpush2.xpose.msra.mxu0 0.0
  %476 = vmatprep.subr.mxu0 0.0
  %477 = vmatpush2.xpose.msra.mxu0 0.0
  %478 = vmatprep.subr.mxu0 0.0
  %479 = vmatpush2.xpose.msra.mxu0 0.0
  %480 = vmatprep.subr.mxu0 0.0
  %481 = vmatpush2.xpose.msra.mxu0 0.0
  %482 = vmatprep.subr.mxu0 0.0
  %483 = vmatpush2.xpose.msra.mxu0 0.0
  %484 = vmatprep.subr.mxu0 0.0
  %485 = vmatpush2.xpose.msra.mxu0 0.0
  %486 = vmatprep.subr.mxu0 0.0
  %487 = vmatpush2.xpose.msra.mxu0 0.0
  %488 = vmatprep.subr.mxu0 0.0
  %489 = vmatpush2.xpose.msra.mxu0 0.0
  %490 = vmatprep.mubr.f32.mxu0 0.0
  %491 = vmatmul.mubr.f32.gmra.mxu0 %v147
  %v492 = vpop.f32.mrf.mxu0
  %v493 = vadd.f32 0.0, %v492
  %v494 = vpop.f32.mrf.mxu0
  %495 = vdwg.mxu0
  %496 = vmatprep.subr.mxu0 0.0
  %497 = vmatpush1.xpose.msra.mxu0 0.0
  %498 = vmatprep.subr.mxu0 0.0
  %499 = vmatpush1.xpose.msra.mxu0 0.0
  %500 = vmatprep.subr.mxu0 0.0
  %501 = vmatpush1.xpose.msra.mxu0 0.0
  %502 = vmatprep.subr.mxu0 0.0
  %503 = vmatpush1.xpose.msra.mxu0 0.0
  %504 = vmatprep.subr.mxu0 0.0
  %505 = vmatpush1.xpose.msra.mxu0 0.0
  %506 = vmatprep.subr.mxu0 0.0
  %507 = vmatpush1.xpose.msra.mxu0 0.0
  %508 = vmatprep.subr.mxu0 0.0
  %509 = vmatpush1.xpose.msra.mxu0 0.0
  %510 = vmatprep.subr.mxu0 0.0
  %511 = vmatpush1.xpose.msra.mxu0 0.0
  %512 = vmatprep.subr.mxu0 0.0
  %513 = vmatpush1.xpose.msra.mxu0 0.0
  %514 = vmatprep.subr.mxu0 0.0
  %515 = vmatpush1.xpose.msra.mxu0 0.0
  %516 = vmatprep.subr.mxu0 0.0
  %517 = vmatpush1.xpose.msra.mxu0 0.0
  %518 = vmatprep.subr.mxu0 0.0
  %519 = vmatpush1.xpose.msra.mxu0 0.0
  %520 = vmatprep.subr.mxu0 0.0
  %521 = vmatpush1.xpose.msra.mxu0 0.0
  %522 = vmatprep.subr.mxu0 0.0
  %523 = vmatpush1.xpose.msra.mxu0 0.0
  %524 = vmatprep.subr.mxu0 0.0
  %525 = vmatpush1.xpose.msra.mxu0 0.0
  %526 = vmatprep.subr.mxu0 0.0
  %527 = vmatpush1.xpose.msra.mxu0 %v155
  %528 = vmatprep.subr.mxu0 0.0
  %529 = vmatpush2.xpose.msra.mxu0 0.0
  %530 = vmatprep.subr.mxu0 0.0
  %531 = vmatpush2.xpose.msra.mxu0 0.0
  %532 = vmatprep.subr.mxu0 0.0
  %533 = vmatpush2.xpose.msra.mxu0 0.0
  %534 = vmatprep.subr.mxu0 0.0
  %535 = vmatpush2.xpose.msra.mxu0 0.0
  %536 = vmatprep.subr.mxu0 0.0
  %537 = vmatpush2.xpose.msra.mxu0 0.0
  %538 = vmatprep.subr.mxu0 0.0
  %539 = vmatpush2.xpose.msra.mxu0 0.0
  %540 = vmatprep.subr.mxu0 0.0
  %541 = vmatpush2.xpose.msra.mxu0 0.0
  %542 = vmatprep.subr.mxu0 0.0
  %543 = vmatpush2.xpose.msra.mxu0 0.0
  %544 = vmatprep.subr.mxu0 0.0
  %545 = vmatpush2.xpose.msra.mxu0 0.0
  %546 = vmatprep.subr.mxu0 0.0
  %547 = vmatpush2.xpose.msra.mxu0 0.0
  %548 = vmatprep.subr.mxu0 0.0
  %549 = vmatpush2.xpose.msra.mxu0 0.0
  %550 = vmatprep.subr.mxu0 0.0
  %551 = vmatpush2.xpose.msra.mxu0 0.0
  %552 = vmatprep.subr.mxu0 0.0
  %553 = vmatpush2.xpose.msra.mxu0 0.0
  %554 = vmatprep.subr.mxu0 0.0
  %555 = vmatpush2.xpose.msra.mxu0 0.0
  %556 = vmatprep.subr.mxu0 0.0
  %557 = vmatpush2.xpose.msra.mxu0 0.0
  %558 = vmatprep.subr.mxu0 0.0
  %559 = vmatpush2.xpose.msra.mxu0 0.0
  %560 = vmatprep.mubr.f32.mxu0 0.0
  %561 = vmatmul.mubr.f32.gmra.mxu0 %v153
  %v562 = vpop.f32.mrf.mxu0
  %v563 = vadd.f32 0.0, %v562
  %v564 = vpop.f32.mrf.mxu0
  %565 = vdwg.mxu0
  %566 = vmatprep.subr.mxu0 0.0
  %567 = vmatpush1.xpose.msra.mxu0 0.0
  %568 = vmatprep.subr.mxu0 0.0
  %569 = vmatpush1.xpose.msra.mxu0 0.0
  %570 = vmatprep.subr.mxu0 0.0
  %571 = vmatpush1.xpose.msra.mxu0 0.0
  %572 = vmatprep.subr.mxu0 0.0
  %573 = vmatpush1.xpose.msra.mxu0 0.0
  %574 = vmatprep.subr.mxu0 0.0
  %575 = vmatpush1.xpose.msra.mxu0 0.0
  %576 = vmatprep.subr.mxu0 0.0
  %577 = vmatpush1.xpose.msra.mxu0 0.0
  %578 = vmatprep.subr.mxu0 0.0
  %579 = vmatpush1.xpose.msra.mxu0 0.0
  %580 = vmatprep.subr.mxu0 0.0
  %581 = vmatpush1.xpose.msra.mxu0 0.0
  %582 = vmatprep.subr.mxu0 0.0
  %583 = vmatpush1.xpose.msra.mxu0 0.0
  %584 = vmatprep.subr.mxu0 0.0
  %585 = vmatpush1.xpose.msra.mxu0 0.0
  %586 = vmatprep.subr.mxu0 0.0
  %587 = vmatpush1.xpose.msra.mxu0 0.0
  %588 = vmatprep.subr.mxu0 0.0
  %589 = vmatpush1.xpose.msra.mxu0 0.0
  %590 = vmatprep.subr.mxu0 0.0
  %591 = vmatpush1.xpose.msra.mxu0 0.0
  %592 = vmatprep.subr.mxu0 0.0
  %593 = vmatpush1.xpose.msra.mxu0 0.0
  %594 = vmatprep.subr.mxu0 0.0
  %595 = vmatpush1.xpose.msra.mxu0 0.0
  %596 = vmatprep.subr.mxu0 0.0
  %597 = vmatpush1.xpose.msra.mxu0 %v161
  %598 = vmatprep.subr.mxu0 0.0
  %599 = vmatpush2.xpose.msra.mxu0 0.0
  %600 = vmatprep.subr.mxu0 0.0
  %601 = vmatpush2.xpose.msra.mxu0 0.0
  %602 = vmatprep.subr.mxu0 0.0
  %603 = vmatpush2.xpose.msra.mxu0 0.0
  %604 = vmatprep.subr.mxu0 0.0
  %605 = vmatpush2.xpose.msra.mxu0 0.0
  %606 = vmatprep.subr.mxu0 0.0
  %607 = vmatpush2.xpose.msra.mxu0 0.0
  %608 = vmatprep.subr.mxu0 0.0
  %609 = vmatpush2.xpose.msra.mxu0 0.0
  %610 = vmatprep.subr.mxu0 0.0
  %611 = vmatpush2.xpose.msra.mxu0 0.0
  %612 = vmatprep.subr.mxu0 0.0
  %613 = vmatpush2.xpose.msra.mxu0 0.0
  %614 = vmatprep.subr.mxu0 0.0
  %615 = vmatpush2.xpose.msra.mxu0 0.0
  %616 = vmatprep.subr.mxu0 0.0
  %617 = vmatpush2.xpose.msra.mxu0 0.0
  %618 = vmatprep.subr.mxu0 0.0
  %619 = vmatpush2.xpose.msra.mxu0 0.0
  %620 = vmatprep.subr.mxu0 0.0
  %621 = vmatpush2.xpose.msra.mxu0 0.0
  %622 = vmatprep.subr.mxu0 0.0
  %623 = vmatpush2.xpose.msra.mxu0 0.0
  %624 = vmatprep.subr.mxu0 0.0
  %625 = vmatpush2.xpose.msra.mxu0 0.0
  %626 = vmatprep.subr.mxu0 0.0
  %627 = vmatpush2.xpose.msra.mxu0 0.0
  %628 = vmatprep.subr.mxu0 0.0
  %629 = vmatpush2.xpose.msra.mxu0 0.0
  %630 = vmatprep.mubr.f32.mxu0 0.0
  %631 = vmatmul.mubr.f32.gmra.mxu0 %v159
  %v632 = vpop.f32.mrf.mxu0
  %v633 = vadd.f32 0.0, %v632
  %v634 = vpop.f32.mrf.mxu0
  %635 = vdwg.mxu0
  %636 = vmatprep.subr.mxu0 0.0
  %637 = vmatpush1.xpose.msra.mxu0 0.0
  %638 = vmatprep.subr.mxu0 0.0
  %639 = vmatpush1.xpose.msra.mxu0 0.0
  %640 = vmatprep.subr.mxu0 0.0
  %641 = vmatpush1.xpose.msra.mxu0 0.0
  %642 = vmatprep.subr.mxu0 0.0
  %643 = vmatpush1.xpose.msra.mxu0 0.0
  %644 = vmatprep.subr.mxu0 0.0
  %645 = vmatpush1.xpose.msra.mxu0 0.0
  %646 = vmatprep.subr.mxu0 0.0
  %647 = vmatpush1.xpose.msra.mxu0 0.0
  %648 = vmatprep.subr.mxu0 0.0
  %649 = vmatpush1.xpose.msra.mxu0 0.0
  %650 = vmatprep.subr.mxu0 0.0
  %651 = vmatpush1.xpose.msra.mxu0 0.0
  %652 = vmatprep.subr.mxu0 0.0
  %653 = vmatpush1.xpose.msra.mxu0 0.0
  %654 = vmatprep.subr.mxu0 0.0
  %655 = vmatpush1.xpose.msra.mxu0 0.0
  %656 = vmatprep.subr.mxu0 0.0
  %657 = vmatpush1.xpose.msra.mxu0 0.0
  %658 = vmatprep.subr.mxu0 0.0
  %659 = vmatpush1.xpose.msra.mxu0 0.0
  %660 = vmatprep.subr.mxu0 0.0
  %661 = vmatpush1.xpose.msra.mxu0 0.0
  %662 = vmatprep.subr.mxu0 0.0
  %663 = vmatpush1.xpose.msra.mxu0 0.0
  %664 = vmatprep.subr.mxu0 0.0
  %665 = vmatpush1.xpose.msra.mxu0 0.0
  %666 = vmatprep.subr.mxu0 0.0
  %667 = vmatpush1.xpose.msra.mxu0 %v167
  %668 = vmatprep.subr.mxu0 0.0
  %669 = vmatpush2.xpose.msra.mxu0 0.0
  %670 = vmatprep.subr.mxu0 0.0
  %671 = vmatpush2.xpose.msra.mxu0 0.0
  %672 = vmatprep.subr.mxu0 0.0
  %673 = vmatpush2.xpose.msra.mxu0 0.0
  %674 = vmatprep.subr.mxu0 0.0
  %675 = vmatpush2.xpose.msra.mxu0 0.0
  %676 = vmatprep.subr.mxu0 0.0
  %677 = vmatpush2.xpose.msra.mxu0 0.0
  %678 = vmatprep.subr.mxu0 0.0
  %679 = vmatpush2.xpose.msra.mxu0 0.0
  %680 = vmatprep.subr.mxu0 0.0
  %681 = vmatpush2.xpose.msra.mxu0 0.0
  %682 = vmatprep.subr.mxu0 0.0
  %683 = vmatpush2.xpose.msra.mxu0 0.0
  %684 = vmatprep.subr.mxu0 0.0
  %685 = vmatpush2.xpose.msra.mxu0 0.0
  %686 = vmatprep.subr.mxu0 0.0
  %687 = vmatpush2.xpose.msra.mxu0 0.0
  %688 = vmatprep.subr.mxu0 0.0
  %689 = vmatpush2.xpose.msra.mxu0 0.0
  %690 = vmatprep.subr.mxu0 0.0
  %691 = vmatpush2.xpose.msra.mxu0 0.0
  %692 = vmatprep.subr.mxu0 0.0
  %693 = vmatpush2.xpose.msra.mxu0 0.0
  %694 = vmatprep.subr.mxu0 0.0
  %695 = vmatpush2.xpose.msra.mxu0 0.0
  %696 = vmatprep.subr.mxu0 0.0
  %697 = vmatpush2.xpose.msra.mxu0 0.0
  %698 = vmatprep.subr.mxu0 0.0
  %699 = vmatpush2.xpose.msra.mxu0 0.0
  %700 = vmatprep.mubr.f32.mxu0 0.0
  %701 = vmatmul.mubr.f32.gmra.mxu0 %v165
  %v702 = vpop.f32.mrf.mxu0
  %v703 = vadd.f32 0.0, %v702
  %v704 = vpop.f32.mrf.mxu0
  %705 = vdwg.mxu0
  %706 = vmatprep.subr.mxu0 0.0
  %707 = vmatpush1.xpose.msra.mxu0 0.0
  %708 = vmatprep.subr.mxu0 0.0
  %709 = vmatpush1.xpose.msra.mxu0 0.0
  %710 = vmatprep.subr.mxu0 0.0
  %711 = vmatpush1.xpose.msra.mxu0 0.0
  %712 = vmatprep.subr.mxu0 0.0
  %713 = vmatpush1.xpose.msra.mxu0 0.0
  %714 = vmatprep.subr.mxu0 0.0
  %715 = vmatpush1.xpose.msra.mxu0 0.0
  %716 = vmatprep.subr.mxu0 0.0
  %717 = vmatpush1.xpose.msra.mxu0 0.0
  %718 = vmatprep.subr.mxu0 0.0
  %719 = vmatpush1.xpose.msra.mxu0 0.0
  %720 = vmatprep.subr.mxu0 0.0
  %721 = vmatpush1.xpose.msra.mxu0 0.0
  %722 = vmatprep.subr.mxu0 0.0
  %723 = vmatpush1.xpose.msra.mxu0 0.0
  %724 = vmatprep.subr.mxu0 0.0
  %725 = vmatpush1.xpose.msra.mxu0 0.0
  %726 = vmatprep.subr.mxu0 0.0
  %727 = vmatpush1.xpose.msra.mxu0 0.0
  %728 = vmatprep.subr.mxu0 0.0
  %729 = vmatpush1.xpose.msra.mxu0 0.0
  %730 = vmatprep.subr.mxu0 0.0
  %731 = vmatpush1.xpose.msra.mxu0 0.0
  %732 = vmatprep.subr.mxu0 0.0
  %733 = vmatpush1.xpose.msra.mxu0 0.0
  %734 = vmatprep.subr.mxu0 0.0
  %735 = vmatpush1.xpose.msra.mxu0 0.0
  %736 = vmatprep.subr.mxu0 0.0
  %737 = vmatpush1.xpose.msra.mxu0 %v173
  %738 = vmatprep.subr.mxu0 0.0
  %739 = vmatpush2.xpose.msra.mxu0 0.0
  %740 = vmatprep.subr.mxu0 0.0
  %741 = vmatpush2.xpose.msra.mxu0 0.0
  %742 = vmatprep.subr.mxu0 0.0
  %743 = vmatpush2.xpose.msra.mxu0 0.0
  %744 = vmatprep.subr.mxu0 0.0
  %745 = vmatpush2.xpose.msra.mxu0 0.0
  %746 = vmatprep.subr.mxu0 0.0
  %747 = vmatpush2.xpose.msra.mxu0 0.0
  %748 = vmatprep.subr.mxu0 0.0
  %749 = vmatpush2.xpose.msra.mxu0 0.0
  %750 = vmatprep.subr.mxu0 0.0
  %751 = vmatpush2.xpose.msra.mxu0 0.0
  %752 = vmatprep.subr.mxu0 0.0
  %753 = vmatpush2.xpose.msra.mxu0 0.0
  %754 = vmatprep.subr.mxu0 0.0
  %755 = vmatpush2.xpose.msra.mxu0 0.0
  %756 = vmatprep.subr.mxu0 0.0
  %757 = vmatpush2.xpose.msra.mxu0 0.0
  %758 = vmatprep.subr.mxu0 0.0
  %759 = vmatpush2.xpose.msra.mxu0 0.0
  %760 = vmatprep.subr.mxu0 0.0
  %761 = vmatpush2.xpose.msra.mxu0 0.0
  %762 = vmatprep.subr.mxu0 0.0
  %763 = vmatpush2.xpose.msra.mxu0 0.0
  %764 = vmatprep.subr.mxu0 0.0
  %765 = vmatpush2.xpose.msra.mxu0 0.0
  %766 = vmatprep.subr.mxu0 0.0
  %767 = vmatpush2.xpose.msra.mxu0 0.0
  %768 = vmatprep.subr.mxu0 0.0
  %769 = vmatpush2.xpose.msra.mxu0 0.0
  %770 = vmatprep.mubr.f32.mxu0 0.0
  %771 = vmatmul.mubr.f32.gmra.mxu0 %v171
  %v772 = vpop.f32.mrf.mxu0
  %v773 = vadd.f32 0.0, %v772
  %v774 = vpop.f32.mrf.mxu0
  %775 = vdwg.mxu0
  %776 = vmatprep.subr.mxu0 0.0
  %777 = vmatpush1.xpose.msra.mxu0 0.0
  %778 = vmatprep.subr.mxu0 0.0
  %779 = vmatpush1.xpose.msra.mxu0 0.0
  %780 = vmatprep.subr.mxu0 0.0
  %781 = vmatpush1.xpose.msra.mxu0 0.0
  %782 = vmatprep.subr.mxu0 0.0
  %783 = vmatpush1.xpose.msra.mxu0 0.0
  %784 = vmatprep.subr.mxu0 0.0
  %785 = vmatpush1.xpose.msra.mxu0 0.0
  %786 = vmatprep.subr.mxu0 0.0
  %787 = vmatpush1.xpose.msra.mxu0 0.0
  %788 = vmatprep.subr.mxu0 0.0
  %789 = vmatpush1.xpose.msra.mxu0 0.0
  %790 = vmatprep.subr.mxu0 0.0
  %791 = vmatpush1.xpose.msra.mxu0 0.0
  %792 = vmatprep.subr.mxu0 0.0
  %793 = vmatpush1.xpose.msra.mxu0 0.0
  %794 = vmatprep.subr.mxu0 0.0
  %795 = vmatpush1.xpose.msra.mxu0 0.0
  %796 = vmatprep.subr.mxu0 0.0
  %797 = vmatpush1.xpose.msra.mxu0 0.0
  %798 = vmatprep.subr.mxu0 0.0
  %799 = vmatpush1.xpose.msra.mxu0 0.0
  %800 = vmatprep.subr.mxu0 0.0
  %801 = vmatpush1.xpose.msra.mxu0 0.0
  %802 = vmatprep.subr.mxu0 0.0
  %803 = vmatpush1.xpose.msra.mxu0 0.0
  %804 = vmatprep.subr.mxu0 0.0
  %805 = vmatpush1.xpose.msra.mxu0 0.0
  %806 = vmatprep.subr.mxu0 0.0
  %807 = vmatpush1.xpose.msra.mxu0 %v179
  %808 = vmatprep.subr.mxu0 0.0
  %809 = vmatpush2.xpose.msra.mxu0 0.0
  %810 = vmatprep.subr.mxu0 0.0
  %811 = vmatpush2.xpose.msra.mxu0 0.0
  %812 = vmatprep.subr.mxu0 0.0
  %813 = vmatpush2.xpose.msra.mxu0 0.0
  %814 = vmatprep.subr.mxu0 0.0
  %815 = vmatpush2.xpose.msra.mxu0 0.0
  %816 = vmatprep.subr.mxu0 0.0
  %817 = vmatpush2.xpose.msra.mxu0 0.0
  %818 = vmatprep.subr.mxu0 0.0
  %819 = vmatpush2.xpose.msra.mxu0 0.0
  %820 = vmatprep.subr.mxu0 0.0
  %821 = vmatpush2.xpose.msra.mxu0 0.0
  %822 = vmatprep.subr.mxu0 0.0
  %823 = vmatpush2.xpose.msra.mxu0 0.0
  %824 = vmatprep.subr.mxu0 0.0
  %825 = vmatpush2.xpose.msra.mxu0 0.0
  %826 = vmatprep.subr.mxu0 0.0
  %827 = vmatpush2.xpose.msra.mxu0 0.0
  %828 = vmatprep.subr.mxu0 0.0
  %829 = vmatpush2.xpose.msra.mxu0 0.0
  %830 = vmatprep.subr.mxu0 0.0
  %831 = vmatpush2.xpose.msra.mxu0 0.0
  %832 = vmatprep.subr.mxu0 0.0
  %833 = vmatpush2.xpose.msra.mxu0 0.0
  %834 = vmatprep.subr.mxu0 0.0
  %835 = vmatpush2.xpose.msra.mxu0 0.0
  %836 = vmatprep.subr.mxu0 0.0
  %837 = vmatpush2.xpose.msra.mxu0 0.0
  %838 = vmatprep.subr.mxu0 0.0
  %839 = vmatpush2.xpose.msra.mxu0 0.0
  %840 = vmatprep.mubr.f32.mxu0 0.0
  %841 = vmatmul.mubr.f32.gmra.mxu0 %v177
  %v842 = vpop.f32.mrf.mxu0
  %v843 = vadd.f32 0.0, %v842
  %v844 = vpop.f32.mrf.mxu0
  %845 = vdwg.mxu0
  %v846 = vmul.f32 %v353, 0.125
  %v847 = vmul.f32 %v423, 0.125
  %v848 = vmul.f32 %v493, 0.125
  %v849 = vmul.f32 %v563, 0.125
  %v850 = vmul.f32 %v633, 0.125
  %v851 = vmul.f32 %v703, 0.125
  %v852 = vmul.f32 %v773, 0.125
  %v853 = vmul.f32 %v843, 0.125
  %v854 = vlaneseq
  %v855 = vshrl.u32 %v854, 7
  %v856 = vlaneseq
  %v857 = vand.u32 %v856, 127
  %vm858 = vcmp.le.s32.totalorder %v857, %v855
  %v859 = vsel %vm858, 1, 0
  %vm860 = vcmp.eq.s32.totalorder %v859, 1
  %v861 = vsel %vm860, %v846, -inf
  %v862 = vsel %vm860, %v847, -inf
  %v863 = vsel %vm860, %v848, -inf
  %v864 = vsel %vm860, %v849, -inf
  %v865 = vsel %vm860, %v850, -inf
  %v866 = vsel %vm860, %v851, -inf
  %v867 = vsel %vm860, %v852, -inf
  %v868 = vsel %vm860, %v853, -inf
  %vm869 = vcmask 64512
  %v870 = vsel %vm869, %v861, -inf
  %871 = vmax.xlane.f32.xlu0 %v870
  %v872 = vpop.xlane.xlu0 %871
  %v873 = vsel %vm869, %v862, -inf
  %874 = vmax.xlane.f32.xlu0 %v873
  %v875 = vpop.xlane.xlu0 %874
  %v876 = vsel %vm869, %v863, -inf
  %877 = vmax.xlane.f32.xlu0 %v876
  %v878 = vpop.xlane.xlu0 %877
  %v879 = vsel %vm869, %v864, -inf
  %880 = vmax.xlane.f32.xlu0 %v879
  %v881 = vpop.xlane.xlu0 %880
  %v882 = vsel %vm869, %v865, -inf
  %883 = vmax.xlane.f32.xlu0 %v882
  %v884 = vpop.xlane.xlu0 %883
  %v885 = vsel %vm869, %v866, -inf
  %886 = vmax.xlane.f32.xlu0 %v885
  %v887 = vpop.xlane.xlu0 %886
  %v888 = vsel %vm869, %v867, -inf
  %889 = vmax.xlane.f32.xlu0 %v888
  %v890 = vpop.xlane.xlu0 %889
  %v891 = vsel %vm869, %v868, -inf
  %892 = vmax.xlane.f32.xlu0 %v891
  %v893 = vpop.xlane.xlu0 %892
  %v894 = vsub.f32 %v861, %v872
  %v895 = vsub.f32 %v862, %v875
  %v896 = vsub.f32 %v863, %v878
  %v897 = vsub.f32 %v864, %v881
  %v898 = vsub.f32 %v865, %v884
  %v899 = vsub.f32 %v866, %v887
  %v900 = vsub.f32 %v867, %v890
  %v901 = vsub.f32 %v868, %v893
  %v902 = vmul.f32 %v894, 1.442695
  %v903 = vpow.pop %v902
  %v904 = vmul.f32 %v895, 1.442695
  %v905 = vpow.pop %v904
  %v906 = vmul.f32 %v896, 1.442695
  %v907 = vpow.pop %v906
  %v908 = vmul.f32 %v897, 1.442695
  %v909 = vpow.pop %v908
  %v910 = vmul.f32 %v898, 1.442695
  %v911 = vpow.pop %v910
  %v912 = vmul.f32 %v899, 1.442695
  %v913 = vpow.pop %v912
  %v914 = vmul.f32 %v900, 1.442695
  %v915 = vpow.pop %v914
  %v916 = vmul.f32 %v901, 1.442695
  %v917 = vpow.pop %v916
  %v918 = vsel %vm869, %v903, 0.0
  %919 = vadd.xlane.f32.xlu0 %v918
  %v920 = vpop.xlane.xlu0 %919
  %v921 = vsel %vm869, %v905, 0.0
  %922 = vadd.xlane.f32.xlu0 %v921
  %v923 = vpop.xlane.xlu0 %922
  %v924 = vsel %vm869, %v907, 0.0
  %925 = vadd.xlane.f32.xlu0 %v924
  %v926 = vpop.xlane.xlu0 %925
  %v927 = vsel %vm869, %v909, 0.0
  %928 = vadd.xlane.f32.xlu0 %v927
  %v929 = vpop.xlane.xlu0 %928
  %v930 = vsel %vm869, %v911, 0.0
  %931 = vadd.xlane.f32.xlu0 %v930
  %v932 = vpop.xlane.xlu0 %931
  %v933 = vsel %vm869, %v913, 0.0
  %934 = vadd.xlane.f32.xlu0 %v933
  %v935 = vpop.xlane.xlu0 %934
  %v936 = vsel %vm869, %v915, 0.0
  %937 = vadd.xlane.f32.xlu0 %v936
  %v938 = vpop.xlane.xlu0 %937
  %v939 = vsel %vm869, %v917, 0.0
  %940 = vadd.xlane.f32.xlu0 %v939
  %v941 = vpop.xlane.xlu0 %940
  %v942 = vrcp.pop %v920
  %v943 = vrcp.pop %v923
  %v944 = vrcp.pop %v926
  %v945 = vrcp.pop %v929
  %v946 = vrcp.pop %v932
  %v947 = vrcp.pop %v935
  %v948 = vrcp.pop %v938
  %v949 = vrcp.pop %v941
  %v950 = vmul.f32 %v903, %v942
  %v951 = vmul.f32 %v905, %v943
  %v952 = vmul.f32 %v907, %v944
  %v953 = vmul.f32 %v909, %v945
  %v954 = vmul.f32 %v911, %v946
  %v955 = vmul.f32 %v913, %v947
  %v956 = vmul.f32 %v915, %v948
  %v957 = vmul.f32 %v917, %v949
  %v959 = vsel %vm869, %v950, 0
  %961 = vmatprep.subr.mxu0 0.0
  %962 = vmatpush1.msra.mxu0 0.0
  %963 = vmatprep.subr.mxu0 0.0
  %964 = vmatpush1.msra.mxu0 0.0
  %965 = vmatprep.subr.mxu0 0.0
  %966 = vmatpush1.msra.mxu0 0.0
  %967 = vmatprep.subr.mxu0 0.0
  %968 = vmatpush1.msra.mxu0 0.0
  %969 = vmatprep.subr.mxu0 0.0
  %970 = vmatpush1.msra.mxu0 0.0
  %971 = vmatprep.subr.mxu0 0.0
  %972 = vmatpush1.msra.mxu0 0.0
  %973 = vmatprep.subr.mxu0 0.0
  %974 = vmatpush1.msra.mxu0 0.0
  %975 = vmatprep.subr.mxu0 0.0
  %976 = vmatpush1.msra.mxu0 0.0
  %977 = vmatprep.subr.mxu0 0.0
  %978 = vmatpush1.msra.mxu0 0.0
  %979 = vmatprep.subr.mxu0 0.0
  %980 = vmatpush1.msra.mxu0 0.0
  %981 = vmatprep.subr.mxu0 0.0
  %982 = vmatpush1.msra.mxu0 0.0
  %983 = vmatprep.subr.mxu0 0.0
  %984 = vmatpush1.msra.mxu0 0.0
  %985 = vmatprep.subr.mxu0 0.0
  %986 = vmatpush1.msra.mxu0 0.0
  %987 = vmatprep.subr.mxu0 0.0
  %988 = vmatpush1.msra.mxu0 0.0
  %989 = vmatprep.subr.mxu0 0.0
  %990 = vmatpush1.msra.mxu0 0.0
  %991 = vmatprep.subr.mxu0 0.0
  %992 = vmatpush1.msra.mxu0 %v248
  %993 = vmatprep.subr.mxu0 0.0
  %994 = vmatpush2.msra.mxu0 0.0
  %995 = vmatprep.subr.mxu0 0.0
  %996 = vmatpush2.msra.mxu0 0.0
  %997 = vmatprep.subr.mxu0 0.0
  %998 = vmatpush2.msra.mxu0 0.0
  %999 = vmatprep.subr.mxu0 0.0
  %1000 = vmatpush2.msra.mxu0 0.0
  %1001 = vmatprep.subr.mxu0 0.0
  %1002 = vmatpush2.msra.mxu0 0.0
  %1003 = vmatprep.subr.mxu0 0.0
  %1004 = vmatpush2.msra.mxu0 0.0
  %1005 = vmatprep.subr.mxu0 0.0
  %1006 = vmatpush2.msra.mxu0 0.0
  %1007 = vmatprep.subr.mxu0 0.0
  %1008 = vmatpush2.msra.mxu0 0.0
  %1009 = vmatprep.subr.mxu0 0.0
  %1010 = vmatpush2.msra.mxu0 0.0
  %1011 = vmatprep.subr.mxu0 0.0
  %1012 = vmatpush2.msra.mxu0 0.0
  %1013 = vmatprep.subr.mxu0 0.0
  %1014 = vmatpush2.msra.mxu0 0.0
  %1015 = vmatprep.subr.mxu0 0.0
  %1016 = vmatpush2.msra.mxu0 0.0
  %1017 = vmatprep.subr.mxu0 0.0
  %1018 = vmatpush2.msra.mxu0 0.0
  %1019 = vmatprep.subr.mxu0 0.0
  %1020 = vmatpush2.msra.mxu0 0.0
  %1021 = vmatprep.subr.mxu0 0.0
  %1022 = vmatpush2.msra.mxu0 0.0
  %1023 = vmatprep.subr.mxu0 0.0
  %1024 = vmatpush2.msra.mxu0 0.0
  %1025 = vmatprep.mubr.f32.mxu0 0.0
  %1026 = vmatmul.mubr.f32.gmra.mxu0 %v959
  %v1027 = vpop.f32.mrf.mxu0
  %v1028 = vadd.f32 0.0, %v1027
  %v1029 = vpop.f32.mrf.mxu0
  %1030 = vdwg.mxu0
  %v1032 = vsel %vm869, %v951, 0
  %1034 = vmatprep.subr.mxu0 0.0
  %1035 = vmatpush1.msra.mxu0 0.0
  %1036 = vmatprep.subr.mxu0 0.0
  %1037 = vmatpush1.msra.mxu0 0.0
  %1038 = vmatprep.subr.mxu0 0.0
  %1039 = vmatpush1.msra.mxu0 0.0
  %1040 = vmatprep.subr.mxu0 0.0
  %1041 = vmatpush1.msra.mxu0 0.0
  %1042 = vmatprep.subr.mxu0 0.0
  %1043 = vmatpush1.msra.mxu0 0.0
  %1044 = vmatprep.subr.mxu0 0.0
  %1045 = vmatpush1.msra.mxu0 0.0
  %1046 = vmatprep.subr.mxu0 0.0
  %1047 = vmatpush1.msra.mxu0 0.0
  %1048 = vmatprep.subr.mxu0 0.0
  %1049 = vmatpush1.msra.mxu0 0.0
  %1050 = vmatprep.subr.mxu0 0.0
  %1051 = vmatpush1.msra.mxu0 0.0
  %1052 = vmatprep.subr.mxu0 0.0
  %1053 = vmatpush1.msra.mxu0 0.0
  %1054 = vmatprep.subr.mxu0 0.0
  %1055 = vmatpush1.msra.mxu0 0.0
  %1056 = vmatprep.subr.mxu0 0.0
  %1057 = vmatpush1.msra.mxu0 0.0
  %1058 = vmatprep.subr.mxu0 0.0
  %1059 = vmatpush1.msra.mxu0 0.0
  %1060 = vmatprep.subr.mxu0 0.0
  %1061 = vmatpush1.msra.mxu0 0.0
  %1062 = vmatprep.subr.mxu0 0.0
  %1063 = vmatpush1.msra.mxu0 0.0
  %1064 = vmatprep.subr.mxu0 0.0
  %1065 = vmatpush1.msra.mxu0 %v253
  %1066 = vmatprep.subr.mxu0 0.0
  %1067 = vmatpush2.msra.mxu0 0.0
  %1068 = vmatprep.subr.mxu0 0.0
  %1069 = vmatpush2.msra.mxu0 0.0
  %1070 = vmatprep.subr.mxu0 0.0
  %1071 = vmatpush2.msra.mxu0 0.0
  %1072 = vmatprep.subr.mxu0 0.0
  %1073 = vmatpush2.msra.mxu0 0.0
  %1074 = vmatprep.subr.mxu0 0.0
  %1075 = vmatpush2.msra.mxu0 0.0
  %1076 = vmatprep.subr.mxu0 0.0
  %1077 = vmatpush2.msra.mxu0 0.0
  %1078 = vmatprep.subr.mxu0 0.0
  %1079 = vmatpush2.msra.mxu0 0.0
  %1080 = vmatprep.subr.mxu0 0.0
  %1081 = vmatpush2.msra.mxu0 0.0
  %1082 = vmatprep.subr.mxu0 0.0
  %1083 = vmatpush2.msra.mxu0 0.0
  %1084 = vmatprep.subr.mxu0 0.0
  %1085 = vmatpush2.msra.mxu0 0.0
  %1086 = vmatprep.subr.mxu0 0.0
  %1087 = vmatpush2.msra.mxu0 0.0
  %1088 = vmatprep.subr.mxu0 0.0
  %1089 = vmatpush2.msra.mxu0 0.0
  %1090 = vmatprep.subr.mxu0 0.0
  %1091 = vmatpush2.msra.mxu0 0.0
  %1092 = vmatprep.subr.mxu0 0.0
  %1093 = vmatpush2.msra.mxu0 0.0
  %1094 = vmatprep.subr.mxu0 0.0
  %1095 = vmatpush2.msra.mxu0 0.0
  %1096 = vmatprep.subr.mxu0 0.0
  %1097 = vmatpush2.msra.mxu0 0.0
  %1098 = vmatprep.mubr.f32.mxu0 0.0
  %1099 = vmatmul.mubr.f32.gmra.mxu0 %v1032
  %v1100 = vpop.f32.mrf.mxu0
  %v1101 = vadd.f32 0.0, %v1100
  %v1102 = vpop.f32.mrf.mxu0
  %1103 = vdwg.mxu0
  %v1105 = vsel %vm869, %v952, 0
  %1107 = vmatprep.subr.mxu0 0.0
  %1108 = vmatpush1.msra.mxu0 0.0
  %1109 = vmatprep.subr.mxu0 0.0
  %1110 = vmatpush1.msra.mxu0 0.0
  %1111 = vmatprep.subr.mxu0 0.0
  %1112 = vmatpush1.msra.mxu0 0.0
  %1113 = vmatprep.subr.mxu0 0.0
  %1114 = vmatpush1.msra.mxu0 0.0
  %1115 = vmatprep.subr.mxu0 0.0
  %1116 = vmatpush1.msra.mxu0 0.0
  %1117 = vmatprep.subr.mxu0 0.0
  %1118 = vmatpush1.msra.mxu0 0.0
  %1119 = vmatprep.subr.mxu0 0.0
  %1120 = vmatpush1.msra.mxu0 0.0
  %1121 = vmatprep.subr.mxu0 0.0
  %1122 = vmatpush1.msra.mxu0 0.0
  %1123 = vmatprep.subr.mxu0 0.0
  %1124 = vmatpush1.msra.mxu0 0.0
  %1125 = vmatprep.subr.mxu0 0.0
  %1126 = vmatpush1.msra.mxu0 0.0
  %1127 = vmatprep.subr.mxu0 0.0
  %1128 = vmatpush1.msra.mxu0 0.0
  %1129 = vmatprep.subr.mxu0 0.0
  %1130 = vmatpush1.msra.mxu0 0.0
  %1131 = vmatprep.subr.mxu0 0.0
  %1132 = vmatpush1.msra.mxu0 0.0
  %1133 = vmatprep.subr.mxu0 0.0
  %1134 = vmatpush1.msra.mxu0 0.0
  %1135 = vmatprep.subr.mxu0 0.0
  %1136 = vmatpush1.msra.mxu0 0.0
  %1137 = vmatprep.subr.mxu0 0.0
  %1138 = vmatpush1.msra.mxu0 %v258
  %1139 = vmatprep.subr.mxu0 0.0
  %1140 = vmatpush2.msra.mxu0 0.0
  %1141 = vmatprep.subr.mxu0 0.0
  %1142 = vmatpush2.msra.mxu0 0.0
  %1143 = vmatprep.subr.mxu0 0.0
  %1144 = vmatpush2.msra.mxu0 0.0
  %1145 = vmatprep.subr.mxu0 0.0
  %1146 = vmatpush2.msra.mxu0 0.0
  %1147 = vmatprep.subr.mxu0 0.0
  %1148 = vmatpush2.msra.mxu0 0.0
  %1149 = vmatprep.subr.mxu0 0.0
  %1150 = vmatpush2.msra.mxu0 0.0
  %1151 = vmatprep.subr.mxu0 0.0
  %1152 = vmatpush2.msra.mxu0 0.0
  %1153 = vmatprep.subr.mxu0 0.0
  %1154 = vmatpush2.msra.mxu0 0.0
  %1155 = vmatprep.subr.mxu0 0.0
  %1156 = vmatpush2.msra.mxu0 0.0
  %1157 = vmatprep.subr.mxu0 0.0
  %1158 = vmatpush2.msra.mxu0 0.0
  %1159 = vmatprep.subr.mxu0 0.0
  %1160 = vmatpush2.msra.mxu0 0.0
  %1161 = vmatprep.subr.mxu0 0.0
  %1162 = vmatpush2.msra.mxu0 0.0
  %1163 = vmatprep.subr.mxu0 0.0
  %1164 = vmatpush2.msra.mxu0 0.0
  %1165 = vmatprep.subr.mxu0 0.0
  %1166 = vmatpush2.msra.mxu0 0.0
  %1167 = vmatprep.subr.mxu0 0.0
  %1168 = vmatpush2.msra.mxu0 0.0
  %1169 = vmatprep.subr.mxu0 0.0
  %1170 = vmatpush2.msra.mxu0 0.0
  %1171 = vmatprep.mubr.f32.mxu0 0.0
  %1172 = vmatmul.mubr.f32.gmra.mxu0 %v1105
  %v1173 = vpop.f32.mrf.mxu0
  %v1174 = vadd.f32 0.0, %v1173
  %v1175 = vpop.f32.mrf.mxu0
  %1176 = vdwg.mxu0
  %v1178 = vsel %vm869, %v953, 0
  %1180 = vmatprep.subr.mxu0 0.0
  %1181 = vmatpush1.msra.mxu0 0.0
  %1182 = vmatprep.subr.mxu0 0.0
  %1183 = vmatpush1.msra.mxu0 0.0
  %1184 = vmatprep.subr.mxu0 0.0
  %1185 = vmatpush1.msra.mxu0 0.0
  %1186 = vmatprep.subr.mxu0 0.0
  %1187 = vmatpush1.msra.mxu0 0.0
  %1188 = vmatprep.subr.mxu0 0.0
  %1189 = vmatpush1.msra.mxu0 0.0
  %1190 = vmatprep.subr.mxu0 0.0
  %1191 = vmatpush1.msra.mxu0 0.0
  %1192 = vmatprep.subr.mxu0 0.0
  %1193 = vmatpush1.msra.mxu0 0.0
  %1194 = vmatprep.subr.mxu0 0.0
  %1195 = vmatpush1.msra.mxu0 0.0
  %1196 = vmatprep.subr.mxu0 0.0
  %1197 = vmatpush1.msra.mxu0 0.0
  %1198 = vmatprep.subr.mxu0 0.0
  %1199 = vmatpush1.msra.mxu0 0.0
  %1200 = vmatprep.subr.mxu0 0.0
  %1201 = vmatpush1.msra.mxu0 0.0
  %1202 = vmatprep.subr.mxu0 0.0
  %1203 = vmatpush1.msra.mxu0 0.0
  %1204 = vmatprep.subr.mxu0 0.0
  %1205 = vmatpush1.msra.mxu0 0.0
  %1206 = vmatprep.subr.mxu0 0.0
  %1207 = vmatpush1.msra.mxu0 0.0
  %1208 = vmatprep.subr.mxu0 0.0
  %1209 = vmatpush1.msra.mxu0 0.0
  %1210 = vmatprep.subr.mxu0 0.0
  %1211 = vmatpush1.msra.mxu0 %v263
  %1212 = vmatprep.subr.mxu0 0.0
  %1213 = vmatpush2.msra.mxu0 0.0
  %1214 = vmatprep.subr.mxu0 0.0
  %1215 = vmatpush2.msra.mxu0 0.0
  %1216 = vmatprep.subr.mxu0 0.0
  %1217 = vmatpush2.msra.mxu0 0.0
  %1218 = vmatprep.subr.mxu0 0.0
  %1219 = vmatpush2.msra.mxu0 0.0
  %1220 = vmatprep.subr.mxu0 0.0
  %1221 = vmatpush2.msra.mxu0 0.0
  %1222 = vmatprep.subr.mxu0 0.0
  %1223 = vmatpush2.msra.mxu0 0.0
  %1224 = vmatprep.subr.mxu0 0.0
  %1225 = vmatpush2.msra.mxu0 0.0
  %1226 = vmatprep.subr.mxu0 0.0
  %1227 = vmatpush2.msra.mxu0 0.0
  %1228 = vmatprep.subr.mxu0 0.0
  %1229 = vmatpush2.msra.mxu0 0.0
  %1230 = vmatprep.subr.mxu0 0.0
  %1231 = vmatpush2.msra.mxu0 0.0
  %1232 = vmatprep.subr.mxu0 0.0
  %1233 = vmatpush2.msra.mxu0 0.0
  %1234 = vmatprep.subr.mxu0 0.0
  %1235 = vmatpush2.msra.mxu0 0.0
  %1236 = vmatprep.subr.mxu0 0.0
  %1237 = vmatpush2.msra.mxu0 0.0
  %1238 = vmatprep.subr.mxu0 0.0
  %1239 = vmatpush2.msra.mxu0 0.0
  %1240 = vmatprep.subr.mxu0 0.0
  %1241 = vmatpush2.msra.mxu0 0.0
  %1242 = vmatprep.subr.mxu0 0.0
  %1243 = vmatpush2.msra.mxu0 0.0
  %1244 = vmatprep.mubr.f32.mxu0 0.0
  %1245 = vmatmul.mubr.f32.gmra.mxu0 %v1178
  %v1246 = vpop.f32.mrf.mxu0
  %v1247 = vadd.f32 0.0, %v1246
  %v1248 = vpop.f32.mrf.mxu0
  %1249 = vdwg.mxu0
  %v1251 = vsel %vm869, %v954, 0
  %1253 = vmatprep.subr.mxu0 0.0
  %1254 = vmatpush1.msra.mxu0 0.0
  %1255 = vmatprep.subr.mxu0 0.0
  %1256 = vmatpush1.msra.mxu0 0.0
  %1257 = vmatprep.subr.mxu0 0.0
  %1258 = vmatpush1.msra.mxu0 0.0
  %1259 = vmatprep.subr.mxu0 0.0
  %1260 = vmatpush1.msra.mxu0 0.0
  %1261 = vmatprep.subr.mxu0 0.0
  %1262 = vmatpush1.msra.mxu0 0.0
  %1263 = vmatprep.subr.mxu0 0.0
  %1264 = vmatpush1.msra.mxu0 0.0
  %1265 = vmatprep.subr.mxu0 0.0
  %1266 = vmatpush1.msra.mxu0 0.0
  %1267 = vmatprep.subr.mxu0 0.0
  %1268 = vmatpush1.msra.mxu0 0.0
  %1269 = vmatprep.subr.mxu0 0.0
  %1270 = vmatpush1.msra.mxu0 0.0
  %1271 = vmatprep.subr.mxu0 0.0
  %1272 = vmatpush1.msra.mxu0 0.0
  %1273 = vmatprep.subr.mxu0 0.0
  %1274 = vmatpush1.msra.mxu0 0.0
  %1275 = vmatprep.subr.mxu0 0.0
  %1276 = vmatpush1.msra.mxu0 0.0
  %1277 = vmatprep.subr.mxu0 0.0
  %1278 = vmatpush1.msra.mxu0 0.0
  %1279 = vmatprep.subr.mxu0 0.0
  %1280 = vmatpush1.msra.mxu0 0.0
  %1281 = vmatprep.subr.mxu0 0.0
  %1282 = vmatpush1.msra.mxu0 0.0
  %1283 = vmatprep.subr.mxu0 0.0
  %1284 = vmatpush1.msra.mxu0 %v268
  %1285 = vmatprep.subr.mxu0 0.0
  %1286 = vmatpush2.msra.mxu0 0.0
  %1287 = vmatprep.subr.mxu0 0.0
  %1288 = vmatpush2.msra.mxu0 0.0
  %1289 = vmatprep.subr.mxu0 0.0
  %1290 = vmatpush2.msra.mxu0 0.0
  %1291 = vmatprep.subr.mxu0 0.0
  %1292 = vmatpush2.msra.mxu0 0.0
  %1293 = vmatprep.subr.mxu0 0.0
  %1294 = vmatpush2.msra.mxu0 0.0
  %1295 = vmatprep.subr.mxu0 0.0
  %1296 = vmatpush2.msra.mxu0 0.0
  %1297 = vmatprep.subr.mxu0 0.0
  %1298 = vmatpush2.msra.mxu0 0.0
  %1299 = vmatprep.subr.mxu0 0.0
  %1300 = vmatpush2.msra.mxu0 0.0
  %1301 = vmatprep.subr.mxu0 0.0
  %1302 = vmatpush2.msra.mxu0 0.0
  %1303 = vmatprep.subr.mxu0 0.0
  %1304 = vmatpush2.msra.mxu0 0.0
  %1305 = vmatprep.subr.mxu0 0.0
  %1306 = vmatpush2.msra.mxu0 0.0
  %1307 = vmatprep.subr.mxu0 0.0
  %1308 = vmatpush2.msra.mxu0 0.0
  %1309 = vmatprep.subr.mxu0 0.0
  %1310 = vmatpush2.msra.mxu0 0.0
  %1311 = vmatprep.subr.mxu0 0.0
  %1312 = vmatpush2.msra.mxu0 0.0
  %1313 = vmatprep.subr.mxu0 0.0
  %1314 = vmatpush2.msra.mxu0 0.0
  %1315 = vmatprep.subr.mxu0 0.0
  %1316 = vmatpush2.msra.mxu0 0.0
  %1317 = vmatprep.mubr.f32.mxu0 0.0
  %1318 = vmatmul.mubr.f32.gmra.mxu0 %v1251
  %v1319 = vpop.f32.mrf.mxu0
  %v1320 = vadd.f32 0.0, %v1319
  %v1321 = vpop.f32.mrf.mxu0
  %1322 = vdwg.mxu0
  %v1324 = vsel %vm869, %v955, 0
  %1326 = vmatprep.subr.mxu0 0.0
  %1327 = vmatpush1.msra.mxu0 0.0
  %1328 = vmatprep.subr.mxu0 0.0
  %1329 = vmatpush1.msra.mxu0 0.0
  %1330 = vmatprep.subr.mxu0 0.0
  %1331 = vmatpush1.msra.mxu0 0.0
  %1332 = vmatprep.subr.mxu0 0.0
  %1333 = vmatpush1.msra.mxu0 0.0
  %1334 = vmatprep.subr.mxu0 0.0
  %1335 = vmatpush1.msra.mxu0 0.0
  %1336 = vmatprep.subr.mxu0 0.0
  %1337 = vmatpush1.msra.mxu0 0.0
  %1338 = vmatprep.subr.mxu0 0.0
  %1339 = vmatpush1.msra.mxu0 0.0
  %1340 = vmatprep.subr.mxu0 0.0
  %1341 = vmatpush1.msra.mxu0 0.0
  %1342 = vmatprep.subr.mxu0 0.0
  %1343 = vmatpush1.msra.mxu0 0.0
  %1344 = vmatprep.subr.mxu0 0.0
  %1345 = vmatpush1.msra.mxu0 0.0
  %1346 = vmatprep.subr.mxu0 0.0
  %1347 = vmatpush1.msra.mxu0 0.0
  %1348 = vmatprep.subr.mxu0 0.0
  %1349 = vmatpush1.msra.mxu0 0.0
  %1350 = vmatprep.subr.mxu0 0.0
  %1351 = vmatpush1.msra.mxu0 0.0
  %1352 = vmatprep.subr.mxu0 0.0
  %1353 = vmatpush1.msra.mxu0 0.0
  %1354 = vmatprep.subr.mxu0 0.0
  %1355 = vmatpush1.msra.mxu0 0.0
  %1356 = vmatprep.subr.mxu0 0.0
  %1357 = vmatpush1.msra.mxu0 %v273
  %1358 = vmatprep.subr.mxu0 0.0
  %1359 = vmatpush2.msra.mxu0 0.0
  %1360 = vmatprep.subr.mxu0 0.0
  %1361 = vmatpush2.msra.mxu0 0.0
  %1362 = vmatprep.subr.mxu0 0.0
  %1363 = vmatpush2.msra.mxu0 0.0
  %1364 = vmatprep.subr.mxu0 0.0
  %1365 = vmatpush2.msra.mxu0 0.0
  %1366 = vmatprep.subr.mxu0 0.0
  %1367 = vmatpush2.msra.mxu0 0.0
  %1368 = vmatprep.subr.mxu0 0.0
  %1369 = vmatpush2.msra.mxu0 0.0
  %1370 = vmatprep.subr.mxu0 0.0
  %1371 = vmatpush2.msra.mxu0 0.0
  %1372 = vmatprep.subr.mxu0 0.0
  %1373 = vmatpush2.msra.mxu0 0.0
  %1374 = vmatprep.subr.mxu0 0.0
  %1375 = vmatpush2.msra.mxu0 0.0
  %1376 = vmatprep.subr.mxu0 0.0
  %1377 = vmatpush2.msra.mxu0 0.0
  %1378 = vmatprep.subr.mxu0 0.0
  %1379 = vmatpush2.msra.mxu0 0.0
  %1380 = vmatprep.subr.mxu0 0.0
  %1381 = vmatpush2.msra.mxu0 0.0
  %1382 = vmatprep.subr.mxu0 0.0
  %1383 = vmatpush2.msra.mxu0 0.0
  %1384 = vmatprep.subr.mxu0 0.0
  %1385 = vmatpush2.msra.mxu0 0.0
  %1386 = vmatprep.subr.mxu0 0.0
  %1387 = vmatpush2.msra.mxu0 0.0
  %1388 = vmatprep.subr.mxu0 0.0
  %1389 = vmatpush2.msra.mxu0 0.0
  %1390 = vmatprep.mubr.f32.mxu0 0.0
  %1391 = vmatmul.mubr.f32.gmra.mxu0 %v1324
  %v1392 = vpop.f32.mrf.mxu0
  %v1393 = vadd.f32 0.0, %v1392
  %v1394 = vpop.f32.mrf.mxu0
  %1395 = vdwg.mxu0
  %v1397 = vsel %vm869, %v956, 0
  %1399 = vmatprep.subr.mxu0 0.0
  %1400 = vmatpush1.msra.mxu0 0.0
  %1401 = vmatprep.subr.mxu0 0.0
  %1402 = vmatpush1.msra.mxu0 0.0
  %1403 = vmatprep.subr.mxu0 0.0
  %1404 = vmatpush1.msra.mxu0 0.0
  %1405 = vmatprep.subr.mxu0 0.0
  %1406 = vmatpush1.msra.mxu0 0.0
  %1407 = vmatprep.subr.mxu0 0.0
  %1408 = vmatpush1.msra.mxu0 0.0
  %1409 = vmatprep.subr.mxu0 0.0
  %1410 = vmatpush1.msra.mxu0 0.0
  %1411 = vmatprep.subr.mxu0 0.0
  %1412 = vmatpush1.msra.mxu0 0.0
  %1413 = vmatprep.subr.mxu0 0.0
  %1414 = vmatpush1.msra.mxu0 0.0
  %1415 = vmatprep.subr.mxu0 0.0
  %1416 = vmatpush1.msra.mxu0 0.0
  %1417 = vmatprep.subr.mxu0 0.0
  %1418 = vmatpush1.msra.mxu0 0.0
  %1419 = vmatprep.subr.mxu0 0.0
  %1420 = vmatpush1.msra.mxu0 0.0
  %1421 = vmatprep.subr.mxu0 0.0
  %1422 = vmatpush1.msra.mxu0 0.0
  %1423 = vmatprep.subr.mxu0 0.0
  %1424 = vmatpush1.msra.mxu0 0.0
  %1425 = vmatprep.subr.mxu0 0.0
  %1426 = vmatpush1.msra.mxu0 0.0
  %1427 = vmatprep.subr.mxu0 0.0
  %1428 = vmatpush1.msra.mxu0 0.0
  %1429 = vmatprep.subr.mxu0 0.0
  %1430 = vmatpush1.msra.mxu0 %v278
  %1431 = vmatprep.subr.mxu0 0.0
  %1432 = vmatpush2.msra.mxu0 0.0
  %1433 = vmatprep.subr.mxu0 0.0
  %1434 = vmatpush2.msra.mxu0 0.0
  %1435 = vmatprep.subr.mxu0 0.0
  %1436 = vmatpush2.msra.mxu0 0.0
  %1437 = vmatprep.subr.mxu0 0.0
  %1438 = vmatpush2.msra.mxu0 0.0
  %1439 = vmatprep.subr.mxu0 0.0
  %1440 = vmatpush2.msra.mxu0 0.0
  %1441 = vmatprep.subr.mxu0 0.0
  %1442 = vmatpush2.msra.mxu0 0.0
  %1443 = vmatprep.subr.mxu0 0.0
  %1444 = vmatpush2.msra.mxu0 0.0
  %1445 = vmatprep.subr.mxu0 0.0
  %1446 = vmatpush2.msra.mxu0 0.0
  %1447 = vmatprep.subr.mxu0 0.0
  %1448 = vmatpush2.msra.mxu0 0.0
  %1449 = vmatprep.subr.mxu0 0.0
  %1450 = vmatpush2.msra.mxu0 0.0
  %1451 = vmatprep.subr.mxu0 0.0
  %1452 = vmatpush2.msra.mxu0 0.0
  %1453 = vmatprep.subr.mxu0 0.0
  %1454 = vmatpush2.msra.mxu0 0.0
  %1455 = vmatprep.subr.mxu0 0.0
  %1456 = vmatpush2.msra.mxu0 0.0
  %1457 = vmatprep.subr.mxu0 0.0
  %1458 = vmatpush2.msra.mxu0 0.0
  %1459 = vmatprep.subr.mxu0 0.0
  %1460 = vmatpush2.msra.mxu0 0.0
  %1461 = vmatprep.subr.mxu0 0.0
  %1462 = vmatpush2.msra.mxu0 0.0
  %1463 = vmatprep.mubr.f32.mxu0 0.0
  %1464 = vmatmul.mubr.f32.gmra.mxu0 %v1397
  %v1465 = vpop.f32.mrf.mxu0
  %v1466 = vadd.f32 0.0, %v1465
  %v1467 = vpop.f32.mrf.mxu0
  %1468 = vdwg.mxu0
  %v1470 = vsel %vm869, %v957, 0
  %1472 = vmatprep.subr.mxu0 0.0
  %1473 = vmatpush1.msra.mxu0 0.0
  %1474 = vmatprep.subr.mxu0 0.0
  %1475 = vmatpush1.msra.mxu0 0.0
  %1476 = vmatprep.subr.mxu0 0.0
  %1477 = vmatpush1.msra.mxu0 0.0
  %1478 = vmatprep.subr.mxu0 0.0
  %1479 = vmatpush1.msra.mxu0 0.0
  %1480 = vmatprep.subr.mxu0 0.0
  %1481 = vmatpush1.msra.mxu0 0.0
  %1482 = vmatprep.subr.mxu0 0.0
  %1483 = vmatpush1.msra.mxu0 0.0
  %1484 = vmatprep.subr.mxu0 0.0
  %1485 = vmatpush1.msra.mxu0 0.0
  %1486 = vmatprep.subr.mxu0 0.0
  %1487 = vmatpush1.msra.mxu0 0.0
  %1488 = vmatprep.subr.mxu0 0.0
  %1489 = vmatpush1.msra.mxu0 0.0
  %1490 = vmatprep.subr.mxu0 0.0
  %1491 = vmatpush1.msra.mxu0 0.0
  %1492 = vmatprep.subr.mxu0 0.0
  %1493 = vmatpush1.msra.mxu0 0.0
  %1494 = vmatprep.subr.mxu0 0.0
  %1495 = vmatpush1.msra.mxu0 0.0
  %1496 = vmatprep.subr.mxu0 0.0
  %1497 = vmatpush1.msra.mxu0 0.0
  %1498 = vmatprep.subr.mxu0 0.0
  %1499 = vmatpush1.msra.mxu0 0.0
  %1500 = vmatprep.subr.mxu0 0.0
  %1501 = vmatpush1.msra.mxu0 0.0
  %1502 = vmatprep.subr.mxu0 0.0
  %1503 = vmatpush1.msra.mxu0 %v283
  %1504 = vmatprep.subr.mxu0 0.0
  %1505 = vmatpush2.msra.mxu0 0.0
  %1506 = vmatprep.subr.mxu0 0.0
  %1507 = vmatpush2.msra.mxu0 0.0
  %1508 = vmatprep.subr.mxu0 0.0
  %1509 = vmatpush2.msra.mxu0 0.0
  %1510 = vmatprep.subr.mxu0 0.0
  %1511 = vmatpush2.msra.mxu0 0.0
  %1512 = vmatprep.subr.mxu0 0.0
  %1513 = vmatpush2.msra.mxu0 0.0
  %1514 = vmatprep.subr.mxu0 0.0
  %1515 = vmatpush2.msra.mxu0 0.0
  %1516 = vmatprep.subr.mxu0 0.0
  %1517 = vmatpush2.msra.mxu0 0.0
  %1518 = vmatprep.subr.mxu0 0.0
  %1519 = vmatpush2.msra.mxu0 0.0
  %1520 = vmatprep.subr.mxu0 0.0
  %1521 = vmatpush2.msra.mxu0 0.0
  %1522 = vmatprep.subr.mxu0 0.0
  %1523 = vmatpush2.msra.mxu0 0.0
  %1524 = vmatprep.subr.mxu0 0.0
  %1525 = vmatpush2.msra.mxu0 0.0
  %1526 = vmatprep.subr.mxu0 0.0
  %1527 = vmatpush2.msra.mxu0 0.0
  %1528 = vmatprep.subr.mxu0 0.0
  %1529 = vmatpush2.msra.mxu0 0.0
  %1530 = vmatprep.subr.mxu0 0.0
  %1531 = vmatpush2.msra.mxu0 0.0
  %1532 = vmatprep.subr.mxu0 0.0
  %1533 = vmatpush2.msra.mxu0 0.0
  %1534 = vmatprep.subr.mxu0 0.0
  %1535 = vmatpush2.msra.mxu0 0.0
  %1536 = vmatprep.mubr.f32.mxu0 0.0
  %1537 = vmatmul.mubr.f32.gmra.mxu0 %v1470
  %v1538 = vpop.f32.mrf.mxu0
  %v1539 = vadd.f32 0.0, %v1538
  %v1540 = vpop.f32.mrf.mxu0
  %1541 = vdwg.mxu0
  %v1542 = vcombine.low %v1028, %v1174
  %v1543 = vcombine.high %v1028, %v1174
  %v1545 = vunpack.c.l.s4 1983009808
  %v1546 = vunpack.c.0.s8 %v1545
  %v1547 = vlaneseq
  %v1548 = vshrl.u32 %v1547, 7
  %v1549 = vsub.s32 %v1546, %v1548
  %v1550 = vrot.slane %v1542, %v1549
  %v1552 = vunpack.c.l.s4 1983009808
  %v1553 = vunpack.c.0.s8 %v1552
  %v1554 = vlaneseq
  %v1555 = vshrl.u32 %v1554, 7
  %v1556 = vsub.s32 %v1553, %v1555
  %v1557 = vrot.slane %v1543, %v1556
  %v1558 = vcombine.low %v1101, %v1247
  %v1559 = vcombine.high %v1101, %v1247
  %v1561 = vunpack.c.l.s4 1983009808
  %v1562 = vunpack.c.0.s8 %v1561
  %v1563 = vlaneseq
  %v1564 = vshrl.u32 %v1563, 7
  %v1565 = vsub.s32 %v1562, %v1564
  %v1566 = vrot.slane %v1558, %v1565
  %v1568 = vunpack.c.l.s4 1983009808
  %v1569 = vunpack.c.0.s8 %v1568
  %v1570 = vlaneseq
  %v1571 = vshrl.u32 %v1570, 7
  %v1572 = vsub.s32 %v1569, %v1571
  %v1573 = vrot.slane %v1559, %v1572
  %v1574 = vcombine.low %v1320, %v1466
  %v1575 = vcombine.high %v1320, %v1466
  %v1577 = vunpack.c.l.s4 1983009808
  %v1578 = vunpack.c.0.s8 %v1577
  %v1579 = vlaneseq
  %v1580 = vshrl.u32 %v1579, 7
  %v1581 = vsub.s32 %v1578, %v1580
  %v1582 = vrot.slane %v1574, %v1581
  %v1584 = vunpack.c.l.s4 1983009808
  %v1585 = vunpack.c.0.s8 %v1584
  %v1586 = vlaneseq
  %v1587 = vshrl.u32 %v1586, 7
  %v1588 = vsub.s32 %v1585, %v1587
  %v1589 = vrot.slane %v1575, %v1588
  %v1590 = vcombine.low %v1393, %v1539
  %v1591 = vcombine.high %v1393, %v1539
  %v1593 = vunpack.c.l.s4 1983009808
  %v1594 = vunpack.c.0.s8 %v1593
  %v1595 = vlaneseq
  %v1596 = vshrl.u32 %v1595, 7
  %v1597 = vsub.s32 %v1594, %v1596
  %v1598 = vrot.slane %v1590, %v1597
  %v1600 = vunpack.c.l.s4 1983009808
  %v1601 = vunpack.c.0.s8 %v1600
  %v1602 = vlaneseq
  %v1603 = vshrl.u32 %v1602, 7
  %v1604 = vsub.s32 %v1601, %v1603
  %v1605 = vrot.slane %v1591, %v1604
  %v1606 = vcombine.low %v1550, %v1566
  %v1607 = vcombine.high %v1550, %v1566
  %v1609 = vunpack.c.l.s4 1934713408
  %v1610 = vunpack.c.0.s8 %v1609
  %v1611 = vlaneseq
  %v1612 = vshrl.u32 %v1611, 7
  %v1613 = vsub.s32 %v1610, %v1612
  %v1614 = vrot.slane %v1606, %v1613
  %v1616 = vunpack.c.l.s4 1934713408
  %v1617 = vunpack.c.0.s8 %v1616
  %v1618 = vlaneseq
  %v1619 = vshrl.u32 %v1618, 7
  %v1620 = vsub.s32 %v1617, %v1619
  %v1621 = vrot.slane %v1607, %v1620
  %v1622 = vcombine.low %v1557, %v1573
  %v1623 = vcombine.high %v1557, %v1573
  %v1625 = vunpack.c.l.s4 1934713408
  %v1626 = vunpack.c.0.s8 %v1625
  %v1627 = vlaneseq
  %v1628 = vshrl.u32 %v1627, 7
  %v1629 = vsub.s32 %v1626, %v1628
  %v1630 = vrot.slane %v1622, %v1629
  %v1632 = vunpack.c.l.s4 1934713408
  %v1633 = vunpack.c.0.s8 %v1632
  %v1634 = vlaneseq
  %v1635 = vshrl.u32 %v1634, 7
  %v1636 = vsub.s32 %v1633, %v1635
  %v1637 = vrot.slane %v1623, %v1636
  %v1638 = vcombine.low %v1582, %v1598
  %v1639 = vcombine.high %v1582, %v1598
  %v1641 = vunpack.c.l.s4 1934713408
  %v1642 = vunpack.c.0.s8 %v1641
  %v1643 = vlaneseq
  %v1644 = vshrl.u32 %v1643, 7
  %v1645 = vsub.s32 %v1642, %v1644
  %v1646 = vrot.slane %v1638, %v1645
  %v1648 = vunpack.c.l.s4 1934713408
  %v1649 = vunpack.c.0.s8 %v1648
  %v1650 = vlaneseq
  %v1651 = vshrl.u32 %v1650, 7
  %v1652 = vsub.s32 %v1649, %v1651
  %v1653 = vrot.slane %v1639, %v1652
  %v1654 = vcombine.low %v1589, %v1605
  %v1655 = vcombine.high %v1589, %v1605
  %v1657 = vunpack.c.l.s4 1934713408
  %v1658 = vunpack.c.0.s8 %v1657
  %v1659 = vlaneseq
  %v1660 = vshrl.u32 %v1659, 7
  %v1661 = vsub.s32 %v1658, %v1660
  %v1662 = vrot.slane %v1654, %v1661
  %v1664 = vunpack.c.l.s4 1934713408
  %v1665 = vunpack.c.0.s8 %v1664
  %v1666 = vlaneseq
  %v1667 = vshrl.u32 %v1666, 7
  %v1668 = vsub.s32 %v1665, %v1667
  %v1669 = vrot.slane %v1655, %v1668
  %v1670 = vcombine.low %v1614, %v1646
  %v1671 = vcombine.high %v1614, %v1646
  %v1672 = vcombine.low %v1621, %v1653
  %v1673 = vcombine.high %v1621, %v1653
  %v1674 = vcombine.low %v1630, %v1662
  %v1675 = vcombine.high %v1630, %v1662
  %v1676 = vcombine.low %v1637, %v1669
  %v1677 = vcombine.high %v1637, %v1669
  %1679 = vrot.lane.b32.xlu0 %v1671, 16
  %v1680 = vpop.permute.xlu0 %1679
  %1683 = vrot.lane.b32.xlu0 %v1672, 32
  %v1684 = vpop.permute.xlu0 %1683
  %1687 = vrot.lane.b32.xlu0 %v1673, 48
  %v1688 = vpop.permute.xlu0 %1687
  %1691 = vrot.lane.b32.xlu0 %v1674, 64
  %v1692 = vpop.permute.xlu0 %1691
  %1695 = vrot.lane.b32.xlu0 %v1675, 80
  %v1696 = vpop.permute.xlu0 %1695
  %1699 = vrot.lane.b32.xlu0 %v1676, 96
  %v1700 = vpop.permute.xlu0 %1699
  %1703 = vrot.lane.b32.xlu0 %v1677, 112
  %v1704 = vpop.permute.xlu0 %1703
  %vm1706 = vcmask 130048
  %v1707 = vsel %vm1706, %v1670, %v1680
  %vm1708 = vcmask 261120
  %v1709 = vsel %vm1708, %v1707, %v1684
  %vm1710 = vcmask 392192
  %v1711 = vsel %vm1710, %v1709, %v1688
  %v1712 = vsel %vm43, %v1711, %v1692
  %vm1713 = vcmask 654336
  %v1714 = vsel %vm1713, %v1712, %v1696
  %vm1715 = vcmask 785408
  %v1716 = vsel %vm1715, %v1714, %v1700
  %vm1717 = vcmask 916480
  %v1718 = vsel %vm1717, %v1716, %v1704
  %1719 = vst [vmem:[%s2] sm:$0xff] %v1718
  // Predicated region
  $region10: #{head_forward.1} parent=0 // pred_check
    _
  $region11: #{head_forward.1} parent=0 // pred_check_branch
    %1721 = sbr.rel (0) target = $region13
  $region12: #{head_forward.1} parent=0 // pred_region
    _
  $region13: #{head_forward.1} parent=0 // pred_fallthru
    _
  // Predicated region
  $region14: #{head_forward.1} parent=0 // pred_check
    _
  $region15: #{head_forward.1} parent=0 // pred_check_branch
    %1723 = sbr.rel (0) target = $region17
  $region16: #{head_forward.1} parent=0 // pred_region
    _
  $region17: #{head_forward.1} parent=0 // pred_fallthru
    _

</llo_original>
